<compile_context>
chip_gen: v7x
topology: tpu7x:2x2x1
jax: 0.10.0
libtpu: 0.0.40
codegen_flags: <defaults>
</compile_context>

<pallas_src>
import jax
import jax.numpy as jnp
from jax import lax
from jax.experimental import pallas as pl
from jax.experimental.pallas import tpu as pltpu


# Toy stand-in dimensions (real Gemma replaced by deterministic tiny models).
B, S, H, V, NUM_CLASSES = 2, 8, 128, 256, 2
ROWS = B * S              # flattened token rows
OUT_LANES = 128           # lane-dense padded classifier head / scalar output row

# Packed weight-slab row offsets (all sublane-tile aligned for bf16 (16,128) tiles).
_EMB_OFF = 0              # rows [0, V):       [lm_embed | cls_embed | srv_embed]  (V, 3H)
_W1_OFF = V               # rows [V, V+3H):    block-diag(lm_w1, cls_w1, srv_w1)   (3H, 3H)
_HEAD_OFF = V + 3 * H     # rows [V+3H, V+4H): [lm_head_w | cls_head_w_pad]        (H, V+128)
_W_ROWS = V + 4 * H       # 768
_W_COLS = 3 * H           # 384
_B_COLS = 3 * H + V + OUT_LANES   # 768 bias lanes: [b1_cat | lm_head_b | cls_head_b_pad]


# ----------------------------------------------------------------------------
# Single fused forward kernel (no grid: runs once, everything resident in VMEM).
# ----------------------------------------------------------------------------
def _fused_forward_kernel(tok_ref, w_ref, b_ref, thr_ref, out_ref):
    f32, bf16 = jnp.float32, jnp.bfloat16

    tok = tok_ref[...]                                   # (ROWS, 4) int32
    ids = tok[:, 0:1]                                    # token ids
    shift_lab = tok[:, 1:2]                              # next-token labels; <0 => ignore
    mask_col = tok[:, 2:3].astype(f32)                   # attention mask per token
    bin_lab = tok[0:B, 3:4]                              # binary labels live in rows [0, B)

    # ---- fused embedding "gather" for all 3 backbones: exact one-hot @ [E_lm|E_cls|E_srv]
    v_iota = lax.broadcasted_iota(jnp.int32, (ROWS, V), 1)
    one_hot = (v_iota == ids).astype(bf16)               # exact 0/1 row selector
    x_cat = jnp.dot(one_hot, w_ref[_EMB_OFF:_EMB_OFF + V, :],
                    preferred_element_type=f32)          # (ROWS, 3H), exact embed rows

    # ---- three backbones in ONE MXU push via block-diagonal W1: tanh(x @ W1 + b1) ----
    h_cat = jnp.tanh(
        jnp.dot(x_cat.astype(bf16), w_ref[_W1_OFF:_W1_OFF + 3 * H, :],
                preferred_element_type=f32) + b_ref[:, 0:3 * H])      # (ROWS, 3H) f32
    lm_h = h_cat[:, 0:H]
    cls_h = h_cat[:, H:2 * H]
    srv_h = h_cat[:, 2 * H:3 * H]   # gemma7b teacher stand-in (torch.no_grad: forward only)

    # ---- causal-LM head; shifted cross-entropy + global logit mean -------------------
    lm_logits = (jnp.dot(lm_h.astype(bf16), w_ref[_HEAD_OFF:_HEAD_OFF + H, 0:V],
                         preferred_element_type=f32)
                 + b_ref[:, 3 * H:3 * H + V])                          # (ROWS, V)
    m1 = jnp.max(lm_logits, axis=-1, keepdims=True)
    lse1 = jnp.log(jnp.sum(jnp.exp(lm_logits - m1), axis=-1, keepdims=True)) + m1
    gold1 = jnp.sum(jnp.where(v_iota == shift_lab, lm_logits, 0.0),
                    axis=-1, keepdims=True)
    valid1 = (shift_lab >= 0).astype(f32)                # handles ignore_index=-100 too
    causal_lm_loss = (jnp.sum(valid1 * (lse1 - gold1))
                      / jnp.maximum(jnp.sum(valid1), 1.0))
    mean_logits = jnp.mean(lm_logits)

    # ---- sequence classifier: masked-mean pooling + zero-padded 128-lane head --------
    # TODO(synk): HF GemmaForSequenceClassification pools the last non-pad token; the
    # stand-in uses masked-mean pooling.
    mask3 = mask_col.reshape(B, S, 1)
    pooled_sum = jnp.sum(cls_h.reshape(B, S, H) * mask3, axis=1)       # (B, H)
    denom = jnp.maximum(jnp.sum(mask3, axis=1), 1.0)                   # (B, 1)
    pooled = pooled_sum * pl.reciprocal(denom, approx=True)
    cls_logits = (jnp.dot(pooled.astype(bf16),
                          w_ref[_HEAD_OFF:_HEAD_OFF + H, V:V + OUT_LANES],
                          preferred_element_type=f32)
                  + b_ref[:, 3 * H + V:3 * H + V + OUT_LANES])         # (B, OUT_LANES)
    col = lax.broadcasted_iota(jnp.int32, (B, OUT_LANES), 1)
    masked = jnp.where(col < NUM_CLASSES, cls_logits, -1e30)
    m2 = jnp.max(masked, axis=-1, keepdims=True)
    lse2 = jnp.log(jnp.sum(jnp.exp(masked - m2), axis=-1, keepdims=True)) + m2
    gold2 = jnp.sum(jnp.where(col == bin_lab, cls_logits, 0.0),
                    axis=-1, keepdims=True)
    valid2 = (bin_lab >= 0).astype(f32)
    sequence_classifier_loss = (jnp.sum(valid2 * (lse2 - gold2))
                                / jnp.maximum(jnp.sum(valid2), 1.0))

    # ---- distillation: mean cosine similarity along hidden dim (single rsqrt on EUP) -
    dot_hs = jnp.sum(lm_h * srv_h, axis=-1, keepdims=True)
    na2 = jnp.sum(lm_h * lm_h, axis=-1, keepdims=True)
    nb2 = jnp.sum(srv_h * srv_h, axis=-1, keepdims=True)
    distillation_loss = jnp.mean(dot_hs * lax.rsqrt(jnp.maximum(na2 * nb2, 1e-16)))

    # ---- threshold branch combine (threshold is a runtime SMEM scalar: no recompile) -
    thr = thr_ref[0, 0]
    branch_hi = 0.6 * causal_lm_loss + 0.4 * sequence_classifier_loss
    branch_lo = (0.5 * causal_lm_loss + 0.4 * sequence_classifier_loss
                 + 0.1 * causal_lm_loss * distillation_loss)
    combined = jnp.where(mean_logits > thr, branch_hi, branch_lo)

    # Single lane-dense output row: [combined, lm_loss, cls_loss, distill, mean_logits].
    out_col = lax.broadcasted_iota(jnp.int32, (1, OUT_LANES), 1)
    res = jnp.zeros((1, OUT_LANES), f32)
    res = jnp.where(out_col == 0, combined, res)
    res = jnp.where(out_col == 1, causal_lm_loss, res)
    res = jnp.where(out_col == 2, sequence_classifier_loss, res)
    res = jnp.where(out_col == 3, distillation_loss, res)
    res = jnp.where(out_col == 4, mean_logits, res)
    out_ref[...] = res


# ----------------------------------------------------------------------------
# Parameter init / packing and the fused forward wrapper.
# ----------------------------------------------------------------------------
def _init_params():
    keys = jax.random.split(jax.random.PRNGKey(0), 8)
    s, bf16, f32 = 0.02, jnp.bfloat16, jnp.float32

    def w(k, shape):  # MXU operands are stored/shipped in bf16
        return (s * jax.random.normal(k, shape, f32)).astype(bf16)

    return {
        # gemma2b causal LM stand-in
        "lm_embed": w(keys[0], (V, H)), "lm_w1": w(keys[1], (H, H)),
        "lm_b1": jnp.zeros((H,), f32),
        "lm_head_w": w(keys[2], (H, V)), "lm_head_b": jnp.zeros((V,), f32),
        # gemma2b sequence classifier stand-in
        "cls_embed": w(keys[3], (V, H)), "cls_w1": w(keys[4], (H, H)),
        "cls_b1": jnp.zeros((H,), f32),
        "cls_head_w": w(keys[5], (H, NUM_CLASSES)),
        "cls_head_b": jnp.zeros((NUM_CLASSES,), f32),
        # gemma7b teacher stand-in (hidden states only; torch.no_grad in the original)
        "srv_embed": w(keys[6], (V, H)), "srv_w1": w(keys[7], (H, H)),
        "srv_b1": jnp.zeros((H,), f32),
    }


def _pack_params(p):
    """Packs all matmul weights into one bf16 slab and all biases into one f32 slab."""
    bf16, f32 = jnp.bfloat16, jnp.float32
    embed_cat = jnp.concatenate([p["lm_embed"], p["cls_embed"], p["srv_embed"]],
                                axis=1).astype(bf16)                     # (V, 3H)
    w1_bd = jnp.zeros((3 * H, 3 * H), bf16)
    w1_bd = w1_bd.at[0:H, 0:H].set(p["lm_w1"])
    w1_bd = w1_bd.at[H:2 * H, H:2 * H].set(p["cls_w1"])
    w1_bd = w1_bd.at[2 * H:3 * H, 2 * H:3 * H].set(p["srv_w1"])          # (3H, 3H)
    head_cat = jnp.zeros((H, 3 * H), bf16)
    head_cat = head_cat.at[:, 0:V].set(p["lm_head_w"])
    head_cat = head_cat.at[:, V:V + NUM_CLASSES].set(p["cls_head_w"])    # (H, V+128 pad)
    w_all = jnp.concatenate([embed_cat, w1_bd, head_cat], axis=0)        # (_W_ROWS, _W_COLS)

    b_all = jnp.zeros((1, _B_COLS), f32)
    b_all = b_all.at[0, 0:H].set(p["lm_b1"])
    b_all = b_all.at[0, H:2 * H].set(p["cls_b1"])
    b_all = b_all.at[0, 2 * H:3 * H].set(p["srv_b1"])
    b_all = b_all.at[0, 3 * H:3 * H + V].set(p["lm_head_b"])
    b_all = b_all.at[0, 3 * H + V:3 * H + V + NUM_CLASSES].set(p["cls_head_b"])
    return {"w_all": w_all, "b_all": b_all}


def multitask_forward(packed, input_ids, attention_mask, labels, binary_labels,
                      threshold):
    # Per-call glue is only a handful of tiny int32 column ops (<= 64 elements);
    # embedding gathers, backbones, heads, losses and the branch all run in ONE kernel.
    # TODO(synk): this (ROWS,4) int32 slab could be built in-kernel from SMEM scalars,
    # but at 64 int32s the surrounding XLA fusion is negligible.
    ids_col = input_ids.reshape(ROWS, 1).astype(jnp.int32)
    shift_col = jnp.concatenate(
        [labels[:, 1:].astype(jnp.int32), jnp.full((B, 1), -1, jnp.int32)],
        axis=1).reshape(ROWS, 1)
    mask_col = attention_mask.reshape(ROWS, 1).astype(jnp.int32)
    bin_col = jnp.full((ROWS, 1), -1, jnp.int32).at[:B, 0].set(
        binary_labels.astype(jnp.int32))
    tok_i32 = jnp.concatenate([ids_col, shift_col, mask_col, bin_col], axis=1)
    thr = jnp.asarray(threshold, jnp.float32).reshape(1, 1)

    out = pl.pallas_call(
        _fused_forward_kernel,
        out_shape=jax.ShapeDtypeStruct((1, OUT_LANES), jnp.float32),
        # No grid: everything fits VMEM, whole-array blocks => no pointless
        # double-buffering / per-step pipeline bookkeeping for a one-shot kernel.
        in_specs=[
            pl.BlockSpec(memory_space=pltpu.MemorySpace.VMEM),   # tok_i32 slab
            pl.BlockSpec(memory_space=pltpu.MemorySpace.VMEM),   # packed bf16 weights
            pl.BlockSpec(memory_space=pltpu.MemorySpace.VMEM),   # packed f32 biases
            pl.BlockSpec(memory_space=pltpu.MemorySpace.SMEM),   # runtime threshold
        ],
        out_specs=pl.BlockSpec(memory_space=pltpu.MemorySpace.VMEM),
        cost_estimate=pl.CostEstimate(flops=9_000_000, transcendentals=11_000,
                                      bytes_accessed=600_000),
    )(tok_i32, packed["w_all"], packed["b_all"], thr)
    return out[0, 0]


# ----------------------------------------------------------------------------
# Pure-JAX reference (f32 math on the same bf16-stored params) for validation.
# ----------------------------------------------------------------------------
def _reference_forward(params, input_ids, attention_mask, labels, binary_labels,
                       threshold):
    f32 = jnp.float32
    ids = input_ids.reshape(-1)

    def backbone(embed, w1, b1):
        x = jnp.take(embed.astype(f32), ids, axis=0)
        return jnp.tanh(x @ w1.astype(f32) + b1)

    lm_h = backbone(params["lm_embed"], params["lm_w1"], params["lm_b1"])
    cls_h = backbone(params["cls_embed"], params["cls_w1"], params["cls_b1"])
    srv_h = backbone(params["srv_embed"], params["srv_w1"], params["srv_b1"])

    lm_logits = lm_h @ params["lm_head_w"].astype(f32) + params["lm_head_b"]
    shift = jnp.concatenate(
        [labels[:, 1:], jnp.full((B, 1), -1, labels.dtype)], axis=1).reshape(-1)
    logp = jax.nn.log_softmax(lm_logits, axis=-1)
    valid = shift >= 0
    gold = jnp.take_along_axis(logp, jnp.maximum(shift, 0)[:, None], axis=-1)[:, 0]
    causal_lm_loss = (-jnp.sum(jnp.where(valid, gold, 0.0))
                      / jnp.maximum(jnp.sum(valid.astype(f32)), 1.0))
    mean_logits = jnp.mean(lm_logits)

    mask = attention_mask.astype(f32)
    denom = jnp.maximum(mask.sum(axis=1, keepdims=True), 1.0)
    pooled = (cls_h.reshape(B, S, H) * mask[:, :, None]).sum(axis=1) / denom
    cls_logits = pooled @ params["cls_head_w"].astype(f32) + params["cls_head_b"]
    logp2 = jax.nn.log_softmax(cls_logits, axis=-1)
    gold2 = jnp.take_along_axis(logp2, binary_labels[:, None], axis=-1)[:, 0]
    sequence_classifier_loss = -jnp.mean(gold2)

    cos = jnp.sum(lm_h * srv_h, -1) / jnp.maximum(
        jnp.linalg.norm(lm_h, axis=-1) * jnp.linalg.norm(srv_h, axis=-1), 1e-8)
    distillation_loss = jnp.mean(cos)

    hi = 0.6 * causal_lm_loss + 0.4 * sequence_classifier_loss
    lo = (0.5 * causal_lm_loss + 0.4 * sequence_classifier_loss
          + 0.1 * causal_lm_loss * distillation_loss)
    return jnp.where(mean_logits > threshold, hi, lo)


if __name__ == "__main__":
    params = _init_params()
    packed = _pack_params(params)

    key = jax.random.PRNGKey(0)
    k_ids, k_lab, k_bin, _ = jax.random.split(key, 4)
    input_ids = jax.random.randint(k_ids, (B, S), 0, V, dtype=jnp.int32)
    attention_mask = jnp.ones((B, S), dtype=jnp.int32)
    labels = jax.random.randint(k_lab, (B, S), 0, V, dtype=jnp.int32)
    binary_labels = jax.random.randint(k_bin, (B,), 0, NUM_CLASSES, dtype=jnp.int32)

    fwd = jax.jit(multitask_forward)
    # Threshold is a runtime SMEM scalar: both branches run with NO recompilation.
    for thr in (-1.0, 1.0):
        loss = fwd(packed, input_ids, attention_mask, labels, binary_labels,
                   jnp.float32(thr))
        jax.block_until_ready(loss)
        ref = _reference_forward(params, input_ids, attention_mask, labels,
                                 binary_labels, thr)
        assert loss.shape == () and bool(jnp.isfinite(loss))
        # bf16 MXU operands vs f32 reference => small, documented numeric tolerance.
        assert jnp.allclose(loss, ref, rtol=2e-2, atol=2e-3), (float(loss), float(ref))
    print("KERNEL_OK")
</pallas_src>

<mosaic_0001>
module attributes {stable_mosaic.version = 11 : i64} {
  func.func @_fused_forward_kernel(%arg0: memref<16x4xi32, #tpu.memory_space<vmem>>, %arg1: memref<768x384xbf16, #tpu.memory_space<vmem>>, %arg2: memref<1x768xf32, #tpu.memory_space<vmem>>, %arg3: memref<1x1xf32, #tpu.memory_space<smem>>, %arg4: memref<1x128xf32, #tpu.memory_space<vmem>>) attributes {dimension_semantics = [], scalar_prefetch = 0 : i64, scratch_operands = 0 : i64, tpu.core_type = #tpu.core_type<tc>} {
    %c0 = arith.constant 0 : index
    %c0_0 = arith.constant 0 : index
    %0 = vector.load %arg0[%c0, %c0_0] : memref<16x4xi32, #tpu.memory_space<vmem>>, vector<16x4xi32>
    %1 = vector.extract_strided_slice %0 {offsets = [0, 0], sizes = [16, 1], strides = [1, 1]} : vector<16x4xi32> to vector<16x1xi32>
    %2 = vector.extract_strided_slice %0 {offsets = [0, 1], sizes = [16, 1], strides = [1, 1]} : vector<16x4xi32> to vector<16x1xi32>
    %3 = vector.extract_strided_slice %0 {offsets = [0, 2], sizes = [16, 1], strides = [1, 1]} : vector<16x4xi32> to vector<16x1xi32>
    %4 = arith.sitofp %3 : vector<16x1xi32> to vector<16x1xf32>
    %5 = vector.extract_strided_slice %0 {offsets = [0, 3], sizes = [2, 1], strides = [1, 1]} : vector<16x4xi32> to vector<2x1xi32>
    %6 = tpu.iota {dimensions = array<i32: 1>} : vector<16x256xi32>
    %7 = vector.broadcast %1 : vector<16x1xi32> to vector<16x256xi32>
    %8 = arith.cmpi eq, %6, %7 : vector<16x256xi32>
    %9 = arith.extui %8 : vector<16x256xi1> to vector<16x256xi32>
    %10 = arith.sitofp %9 : vector<16x256xi32> to vector<16x256xf32>
    %11 = arith.truncf %10 : vector<16x256xf32> to vector<16x256xbf16>
    %c0_1 = arith.constant 0 : index
    %c0_2 = arith.constant 0 : index
    %12 = vector.load %arg1[%c0_1, %c0_2] : memref<768x384xbf16, #tpu.memory_space<vmem>>, vector<256x384xbf16>
    %cst = arith.constant dense<0.000000e+00> : vector<16x384xf32>
    %13 = tpu.matmul %11, %12, %cst {dimension_numbers = #tpu.dot_dimension_numbers<[1], [0], [0], [1], [0, 0, 1, 1], [], []>} : vector<16x256xbf16>, vector<256x384xbf16>, vector<16x384xf32> -> vector<16x384xf32>
    %14 = arith.truncf %13 : vector<16x384xf32> to vector<16x384xbf16>
    %c256 = arith.constant 256 : index
    %c0_3 = arith.constant 0 : index
    %15 = vector.load %arg1[%c256, %c0_3] : memref<768x384xbf16, #tpu.memory_space<vmem>>, vector<384x384xbf16>
    %cst_4 = arith.constant dense<0.000000e+00> : vector<16x384xf32>
    %16 = tpu.matmul %14, %15, %cst_4 {dimension_numbers = #tpu.dot_dimension_numbers<[1], [0], [0], [1], [0, 0, 1, 1], [], []>} : vector<16x384xbf16>, vector<384x384xbf16>, vector<16x384xf32> -> vector<16x384xf32>
    %c0_5 = arith.constant 0 : index
    %c0_6 = arith.constant 0 : index
    %17 = vector.load %arg2[%c0_5, %c0_6] : memref<1x768xf32, #tpu.memory_space<vmem>>, vector<1x384xf32>
    %18 = vector.broadcast %17 : vector<1x384xf32> to vector<16x384xf32>
    %19 = arith.addf %16, %18 : vector<16x384xf32>
    %20 = math.tanh %19 : vector<16x384xf32>
    %21 = vector.extract_strided_slice %20 {offsets = [0, 0], sizes = [16, 128], strides = [1, 1]} : vector<16x384xf32> to vector<16x128xf32>
    %22 = vector.extract_strided_slice %20 {offsets = [0, 128], sizes = [16, 128], strides = [1, 1]} : vector<16x384xf32> to vector<16x128xf32>
    %23 = vector.extract_strided_slice %20 {offsets = [0, 256], sizes = [16, 128], strides = [1, 1]} : vector<16x384xf32> to vector<16x128xf32>
    %24 = arith.truncf %21 : vector<16x128xf32> to vector<16x128xbf16>
    %c640 = arith.constant 640 : index
    %c0_7 = arith.constant 0 : index
    %25 = vector.load %arg1[%c640, %c0_7] : memref<768x384xbf16, #tpu.memory_space<vmem>>, vector<128x256xbf16>
    %cst_8 = arith.constant dense<0.000000e+00> : vector<16x256xf32>
    %26 = tpu.matmul %24, %25, %cst_8 {dimension_numbers = #tpu.dot_dimension_numbers<[1], [0], [0], [1], [0, 0, 1, 1], [], []>} : vector<16x128xbf16>, vector<128x256xbf16>, vector<16x256xf32> -> vector<16x256xf32>
    %c0_9 = arith.constant 0 : index
    %c384 = arith.constant 384 : index
    %27 = vector.load %arg2[%c0_9, %c384] : memref<1x768xf32, #tpu.memory_space<vmem>>, vector<1x256xf32>
    %28 = vector.broadcast %27 : vector<1x256xf32> to vector<16x256xf32>
    %29 = arith.addf %26, %28 : vector<16x256xf32>
    %cst_10 = arith.constant dense<0xFF800000> : vector<16xf32>
    %30 = vector.multi_reduction <maximumf>, %29, %cst_10 [1] : vector<16x256xf32> to vector<16xf32>
    %31 = vector.shape_cast %30 : vector<16xf32> to vector<16x1xf32>
    %32 = vector.broadcast %31 : vector<16x1xf32> to vector<16x256xf32>
    %33 = arith.subf %29, %32 : vector<16x256xf32>
    %34 = math.exp %33 : vector<16x256xf32>
    %cst_11 = arith.constant dense<0.000000e+00> : vector<16xf32>
    %35 = vector.multi_reduction <add>, %34, %cst_11 [1] : vector<16x256xf32> to vector<16xf32>
    %36 = vector.shape_cast %35 : vector<16xf32> to vector<16x1xf32>
    %37 = math.log %36 : vector<16x1xf32>
    %38 = arith.addf %37, %31 : vector<16x1xf32>
    %39 = vector.broadcast %2 : vector<16x1xi32> to vector<16x256xi32>
    %40 = arith.cmpi eq, %6, %39 : vector<16x256xi32>
    %cst_12 = arith.constant 0.000000e+00 : f32
    %41 = vector.broadcast %cst_12 : f32 to vector<16x256xf32>
    %42 = arith.select %40, %29, %41 : vector<16x256xi1>, vector<16x256xf32>
    %cst_13 = arith.constant dense<0.000000e+00> : vector<16xf32>
    %43 = vector.multi_reduction <add>, %42, %cst_13 [1] : vector<16x256xf32> to vector<16xf32>
    %44 = vector.shape_cast %43 : vector<16xf32> to vector<16x1xf32>
    %c0_i32 = arith.constant 0 : i32
    %45 = vector.broadcast %c0_i32 : i32 to vector<16x1xi32>
    %46 = arith.cmpi sge, %2, %45 : vector<16x1xi32>
    %47 = arith.extui %46 : vector<16x1xi1> to vector<16x1xi32>
    %48 = arith.sitofp %47 : vector<16x1xi32> to vector<16x1xf32>
    %49 = arith.subf %38, %44 : vector<16x1xf32>
    %50 = arith.mulf %48, %49 : vector<16x1xf32>
    %51 = vector.shape_cast %50 : vector<16x1xf32> to vector<1x16x1xf32>
    %cst_14 = arith.constant dense<0.000000e+00> : vector<1xf32>
    %52 = vector.multi_reduction <add>, %51, %cst_14 [1, 2] : vector<1x16x1xf32> to vector<1xf32>
    %53 = vector.shape_cast %52 : vector<1xf32> to vector<1x1x1xf32>
    %54 = vector.extract %53[0, 0, 0] : f32 from vector<1x1x1xf32>
    %55 = vector.shape_cast %48 : vector<16x1xf32> to vector<1x16x1xf32>
    %cst_15 = arith.constant dense<0.000000e+00> : vector<1xf32>
    %56 = vector.multi_reduction <add>, %55, %cst_15 [1, 2] : vector<1x16x1xf32> to vector<1xf32>
    %57 = vector.shape_cast %56 : vector<1xf32> to vector<1x1x1xf32>
    %58 = vector.extract %57[0, 0, 0] : f32 from vector<1x1x1xf32>
    %cst_16 = arith.constant 1.000000e+00 : f32
    %59 = arith.maximumf %58, %cst_16 : f32
    %60 = arith.divf %54, %59 : f32
    %61 = vector.shape_cast %29 : vector<16x256xf32> to vector<1x16x256xf32>
    %cst_17 = arith.constant dense<0.000000e+00> : vector<1xf32>
    %62 = vector.multi_reduction <add>, %61, %cst_17 [1, 2] : vector<1x16x256xf32> to vector<1xf32>
    %63 = vector.shape_cast %62 : vector<1xf32> to vector<1x1x1xf32>
    %64 = vector.extract %63[0, 0, 0] : f32 from vector<1x1x1xf32>
    %cst_18 = arith.constant 4.096000e+03 : f32
    %65 = arith.divf %64, %cst_18 : f32
    %66 = vector.shape_cast %4 : vector<16x1xf32> to vector<2x8x1xf32>
    %67 = vector.shape_cast %22 : vector<16x128xf32> to vector<2x8x128xf32>
    %68 = vector.broadcast %66 : vector<2x8x1xf32> to vector<2x8x128xf32>
    %69 = arith.mulf %67, %68 : vector<2x8x128xf32>
    %cst_19 = arith.constant dense<0.000000e+00> : vector<2x128xf32>
    %70 = vector.multi_reduction <add>, %69, %cst_19 [1] : vector<2x8x128xf32> to vector<2x128xf32>
    %cst_20 = arith.constant dense<0.000000e+00> : vector<2x1xf32>
    %71 = vector.multi_reduction <add>, %66, %cst_20 [1] : vector<2x8x1xf32> to vector<2x1xf32>
    %cst_21 = arith.constant 1.000000e+00 : f32
    %72 = vector.broadcast %cst_21 : f32 to vector<2x1xf32>
    %73 = arith.maximumf %71, %72 : vector<2x1xf32>
    %74 = tpu.reciprocal %73 {approx = true} : vector<2x1xf32> -> vector<2x1xf32>
    %75 = vector.broadcast %74 : vector<2x1xf32> to vector<2x128xf32>
    %76 = arith.mulf %70, %75 : vector<2x128xf32>
    %77 = arith.truncf %76 : vector<2x128xf32> to vector<2x128xbf16>
    %c640_22 = arith.constant 640 : index
    %c256_23 = arith.constant 256 : index
    %78 = vector.load %arg1[%c640_22, %c256_23] : memref<768x384xbf16, #tpu.memory_space<vmem>>, vector<128x128xbf16>
    %cst_24 = arith.constant dense<0.000000e+00> : vector<2x128xf32>
    %79 = tpu.matmul %77, %78, %cst_24 {dimension_numbers = #tpu.dot_dimension_numbers<[1], [0], [0], [1], [0, 0, 1, 1], [], []>} : vector<2x128xbf16>, vector<128x128xbf16>, vector<2x128xf32> -> vector<2x128xf32>
    %c0_25 = arith.constant 0 : index
    %c640_26 = arith.constant 640 : index
    %80 = vector.load %arg2[%c0_25, %c640_26] : memref<1x768xf32, #tpu.memory_space<vmem>>, vector<1x128xf32>
    %81 = vector.broadcast %80 : vector<1x128xf32> to vector<2x128xf32>
    %82 = arith.addf %79, %81 : vector<2x128xf32>
    %83 = tpu.iota {dimensions = array<i32: 1>} : vector<2x128xi32>
    %c2_i32 = arith.constant 2 : i32
    %84 = vector.broadcast %c2_i32 : i32 to vector<2x128xi32>
    %85 = arith.cmpi slt, %83, %84 : vector<2x128xi32>
    %cst_27 = arith.constant -1.000000e+30 : f32
    %86 = vector.broadcast %cst_27 : f32 to vector<2x128xf32>
    %87 = arith.select %85, %82, %86 : vector<2x128xi1>, vector<2x128xf32>
    %cst_28 = arith.constant dense<0xFF800000> : vector<2xf32>
    %88 = vector.multi_reduction <maximumf>, %87, %cst_28 [1] : vector<2x128xf32> to vector<2xf32>
    %89 = vector.shape_cast %88 : vector<2xf32> to vector<2x1xf32>
    %90 = vector.broadcast %89 : vector<2x1xf32> to vector<2x128xf32>
    %91 = arith.subf %87, %90 : vector<2x128xf32>
    %92 = math.exp %91 : vector<2x128xf32>
    %cst_29 = arith.constant dense<0.000000e+00> : vector<2xf32>
    %93 = vector.multi_reduction <add>, %92, %cst_29 [1] : vector<2x128xf32> to vector<2xf32>
    %94 = vector.shape_cast %93 : vector<2xf32> to vector<2x1xf32>
    %95 = math.log %94 : vector<2x1xf32>
    %96 = arith.addf %95, %89 : vector<2x1xf32>
    %97 = vector.broadcast %5 : vector<2x1xi32> to vector<2x128xi32>
    %98 = arith.cmpi eq, %83, %97 : vector<2x128xi32>
    %cst_30 = arith.constant 0.000000e+00 : f32
    %99 = vector.broadcast %cst_30 : f32 to vector<2x128xf32>
    %100 = arith.select %98, %82, %99 : vector<2x128xi1>, vector<2x128xf32>
    %cst_31 = arith.constant dense<0.000000e+00> : vector<2xf32>
    %101 = vector.multi_reduction <add>, %100, %cst_31 [1] : vector<2x128xf32> to vector<2xf32>
    %102 = vector.shape_cast %101 : vector<2xf32> to vector<2x1xf32>
    %c0_i32_32 = arith.constant 0 : i32
    %103 = vector.broadcast %c0_i32_32 : i32 to vector<2x1xi32>
    %104 = arith.cmpi sge, %5, %103 : vector<2x1xi32>
    %105 = arith.extui %104 : vector<2x1xi1> to vector<2x1xi32>
    %106 = arith.sitofp %105 : vector<2x1xi32> to vector<2x1xf32>
    %107 = arith.subf %96, %102 : vector<2x1xf32>
    %108 = arith.mulf %106, %107 : vector<2x1xf32>
    %109 = vector.shape_cast %108 : vector<2x1xf32> to vector<1x2x1xf32>
    %cst_33 = arith.constant dense<0.000000e+00> : vector<1xf32>
    %110 = vector.multi_reduction <add>, %109, %cst_33 [1, 2] : vector<1x2x1xf32> to vector<1xf32>
    %111 = vector.shape_cast %110 : vector<1xf32> to vector<1x1x1xf32>
    %112 = vector.extract %111[0, 0, 0] : f32 from vector<1x1x1xf32>
    %113 = vector.shape_cast %106 : vector<2x1xf32> to vector<1x2x1xf32>
    %cst_34 = arith.constant dense<0.000000e+00> : vector<1xf32>
    %114 = vector.multi_reduction <add>, %113, %cst_34 [1, 2] : vector<1x2x1xf32> to vector<1xf32>
    %115 = vector.shape_cast %114 : vector<1xf32> to vector<1x1x1xf32>
    %116 = vector.extract %115[0, 0, 0] : f32 from vector<1x1x1xf32>
    %cst_35 = arith.constant 1.000000e+00 : f32
    %117 = arith.maximumf %116, %cst_35 : f32
    %118 = arith.divf %112, %117 : f32
    %119 = arith.mulf %21, %23 : vector<16x128xf32>
    %cst_36 = arith.constant dense<0.000000e+00> : vector<16xf32>
    %120 = vector.multi_reduction <add>, %119, %cst_36 [1] : vector<16x128xf32> to vector<16xf32>
    %121 = vector.shape_cast %120 : vector<16xf32> to vector<16x1xf32>
    %122 = arith.mulf %21, %21 : vector<16x128xf32>
    %cst_37 = arith.constant dense<0.000000e+00> : vector<16xf32>
    %123 = vector.multi_reduction <add>, %122, %cst_37 [1] : vector<16x128xf32> to vector<16xf32>
    %124 = vector.shape_cast %123 : vector<16xf32> to vector<16x1xf32>
    %125 = arith.mulf %23, %23 : vector<16x128xf32>
    %cst_38 = arith.constant dense<0.000000e+00> : vector<16xf32>
    %126 = vector.multi_reduction <add>, %125, %cst_38 [1] : vector<16x128xf32> to vector<16xf32>
    %127 = vector.shape_cast %126 : vector<16xf32> to vector<16x1xf32>
    %128 = arith.mulf %124, %127 : vector<16x1xf32>
    %cst_39 = arith.constant 1.000000e-16 : f32
    %129 = vector.broadcast %cst_39 : f32 to vector<16x1xf32>
    %130 = arith.maximumf %128, %129 : vector<16x1xf32>
    %131 = math.rsqrt %130 : vector<16x1xf32>
    %132 = arith.mulf %121, %131 : vector<16x1xf32>
    %133 = vector.shape_cast %132 : vector<16x1xf32> to vector<1x16x1xf32>
    %cst_40 = arith.constant dense<0.000000e+00> : vector<1xf32>
    %134 = vector.multi_reduction <add>, %133, %cst_40 [1, 2] : vector<1x16x1xf32> to vector<1xf32>
    %135 = vector.shape_cast %134 : vector<1xf32> to vector<1x1x1xf32>
    %136 = vector.extract %135[0, 0, 0] : f32 from vector<1x1x1xf32>
    %cst_41 = arith.constant 1.600000e+01 : f32
    %137 = arith.divf %136, %cst_41 : f32
    %c0_42 = arith.constant 0 : index
    %c0_43 = arith.constant 0 : index
    %138 = memref.load %arg3[%c0_42, %c0_43] : memref<1x1xf32, #tpu.memory_space<smem>>
    %cst_44 = arith.constant 6.000000e-01 : f32
    %139 = arith.mulf %cst_44, %60 : f32
    %cst_45 = arith.constant 4.000000e-01 : f32
    %140 = arith.mulf %cst_45, %118 : f32
    %141 = arith.addf %139, %140 : f32
    %cst_46 = arith.constant 5.000000e-01 : f32
    %142 = arith.mulf %cst_46, %60 : f32
    %cst_47 = arith.constant 4.000000e-01 : f32
    %143 = arith.mulf %cst_47, %118 : f32
    %144 = arith.addf %142, %143 : f32
    %cst_48 = arith.constant 1.000000e-01 : f32
    %145 = arith.mulf %cst_48, %60 : f32
    %146 = arith.mulf %145, %137 : f32
    %147 = arith.addf %144, %146 : f32
    %148 = arith.cmpf ogt, %65, %138 : f32
    %149 = arith.select %148, %141, %147 : f32
    %150 = tpu.iota {dimensions = array<i32: 1>} : vector<1x128xi32>
    %cst_49 = arith.constant 0.000000e+00 : f32
    %151 = vector.broadcast %cst_49 : f32 to vector<1x128xf32>
    %c0_i32_50 = arith.constant 0 : i32
    %152 = vector.broadcast %c0_i32_50 : i32 to vector<1x128xi32>
    %153 = arith.cmpi eq, %150, %152 : vector<1x128xi32>
    %154 = vector.broadcast %149 : f32 to vector<1x128xf32>
    %155 = arith.select %153, %154, %151 : vector<1x128xi1>, vector<1x128xf32>
    %c1_i32 = arith.constant 1 : i32
    %156 = vector.broadcast %c1_i32 : i32 to vector<1x128xi32>
    %157 = arith.cmpi eq, %150, %156 : vector<1x128xi32>
    %158 = vector.broadcast %60 : f32 to vector<1x128xf32>
    %159 = arith.select %157, %158, %155 : vector<1x128xi1>, vector<1x128xf32>
    %c2_i32_51 = arith.constant 2 : i32
    %160 = vector.broadcast %c2_i32_51 : i32 to vector<1x128xi32>
    %161 = arith.cmpi eq, %150, %160 : vector<1x128xi32>
    %162 = vector.broadcast %118 : f32 to vector<1x128xf32>
    %163 = arith.select %161, %162, %159 : vector<1x128xi1>, vector<1x128xf32>
    %c3_i32 = arith.constant 3 : i32
    %164 = vector.broadcast %c3_i32 : i32 to vector<1x128xi32>
    %165 = arith.cmpi eq, %150, %164 : vector<1x128xi32>
    %166 = vector.broadcast %137 : f32 to vector<1x128xf32>
    %167 = arith.select %165, %166, %163 : vector<1x128xi1>, vector<1x128xf32>
    %c4_i32 = arith.constant 4 : i32
    %168 = vector.broadcast %c4_i32 : i32 to vector<1x128xi32>
    %169 = arith.cmpi eq, %150, %168 : vector<1x128xi32>
    %170 = vector.broadcast %65 : f32 to vector<1x128xf32>
    %171 = arith.select %169, %170, %167 : vector<1x128xi1>, vector<1x128xf32>
    %c0_52 = arith.constant 0 : index
    %c0_53 = arith.constant 0 : index
    %172 = vector.load %arg4[%c0_52, %c0_53] : memref<1x128xf32, #tpu.memory_space<vmem>>, vector<1x128xf32>
    tpu.vector_store %arg4[%c0_52, %c0_53], %171 {strides = array<i32>} : memref<1x128xf32, #tpu.memory_space<vmem>>, vector<1x128xf32>,
    return
  }
}

</mosaic_0001>

<llo_original>
// kernel: multitask_forward.1
$region0: #{multitask_forward.1}
  #allocation0 [shape = 'u32[]', space=smem, size = 0x4, offset = 0x4, fixed_abs, tag = 'smem constant byte address 0x4 - core index']
  #allocation1 [shape = 'u32[144,128]{1,0:T(1,128)}', space=vmem, size = 0x12000, scoped, tag = 'internal scratch']
  #allocation2 [shape = 'f32[1,1]{1,0:T(1,128)S(6)}', space=smem, size = 0x200, scoped, tag = 'scoped memory for multitask_forward.1']
  %s0 = inlined_call_operand.vmem [shape: s32[16,4], index: 0, kind: input, shape index: {}]
  %s1 = inlined_call_operand.hbm [shape: bf16[768,384], index: 1, kind: input, shape index: {}]
  %s2 = inlined_call_operand.vmem [shape: f32[1,768], index: 2, kind: input, shape index: {}]
  %s3 = inlined_call_operand.<no memory space> [shape: f32[1,1], index: 3, kind: input, shape index: {}]
  %s4 = inlined_call_operand.hbm [shape: f32[1,128], index: 4, kind: output, shape index: {}]
  %s5 = sld [smem:[#allocation0]]
  $region30: #{multitask_forward.1} parent=0
    _
  %s7 = ssub.s32 1, %s5
  %s8 = scalar_select 0, %s7, %s5
  %9 = sst [smem:[#allocation2]] %s3
  $region1: #{multitask_forward.1} parent=0
    #allocation3 [shape = 'u8[589824]{0}', space=vmem, size = 0x90000, scoped, tag = 'input window, operand 1, single buffered']
    #allocation4 [shape = 's32[1]{0}', space=sflag, size = 0x4, scoped, tag = 'scoped memory for multitask_forward.1']
    #allocation5 [shape = 's32[1]{0}', space=sflag, size = 0x4, scoped, tag = 'scoped memory for multitask_forward.1']
    #allocation6 [shape = 'u8[512]{0}', space=vmem, size = 0x400, scoped, tag = 'output window, operand 0, single buffered']
    %10 = vsyncpa [#allocation4], 0
    %11 = vsyncpa [#allocation5], 0
    // Predicated region
    $region2: #{multitask_forward.1} parent=1 // pred_check
      _
    $region3: #{multitask_forward.1} parent=1 // pred_check_branch
      %13 = sbr.rel (0) target = $region5
    $region4: #{multitask_forward.1} parent=1 // pred_region
      _
    $region5: #{multitask_forward.1} parent=1 // pred_fallthru
      _
    // Predicated region
    $region6: #{multitask_forward.1} parent=1 // pred_check
      _
    $region7: #{multitask_forward.1} parent=1 // pred_check_branch
      %15 = sbr.rel (0) target = $region9
    $region8: #{multitask_forward.1} parent=1 // pred_region
      %s17 = ssub.s32 18432, 18432
      %18 = vsyncadd [#allocation4], %s17
      %s19 = sshll.u32 [#allocation3], 4
      %s20 = int_to_ptr.vmem [resolvable:$true] %s19
      %25 = dma.hbm_to_vmem [thread:$0]  %s1, 18432, %s20, [#allocation4], 192, 192, 12
    $region9: #{multitask_forward.1} parent=1 // pred_fallthru
      _
    // Predicated region
    $region10: #{multitask_forward.1} parent=1 // pred_check
      _
    $region11: #{multitask_forward.1} parent=1 // pred_check_branch
      %27 = sbr.rel (0) target = $region13
    $region12: #{multitask_forward.1} parent=1 // pred_region
      _
    $region13: #{multitask_forward.1} parent=1 // pred_fallthru
      _
    // Predicated region
    $region14: #{multitask_forward.1} parent=1 // pred_check
      _
    $region15: #{multitask_forward.1} parent=1 // pred_check_branch
      %29 = sbr.rel (0) target = $region17
    $region16: #{multitask_forward.1} parent=1 // pred_region
      _
    $region17: #{multitask_forward.1} parent=1 // pred_fallthru
      _
    // Predicated region
    $region18: #{multitask_forward.1} parent=1 // pred_check
      _
    $region19: #{multitask_forward.1} parent=1 // pred_check_branch
      %31 = sbr.rel (0) target = $region21
    $region20: #{multitask_forward.1} parent=1 // pred_region
      %32 = dma.done [#allocation4], 18432
    $region21: #{multitask_forward.1} parent=1 // pred_fallthru
      _
    %v34 = vld [vmem:[%s0] sm:$0xff]
    %v35 = vld [vmem:[%s0 + $0x8] sm:$0xff]
    %v36 = vcvt.s32.f32 %v34
    %v37 = vcvt.s32.f32 %v35
    %v38 = vlaneseq
    %v39 = vand.u32 %v38, 127
    %v40 = vadd.s32 %v39, 128
    %41 = vset.pattern.permute.xlu0 0
    %42 = vperm.xlu0 %41, %v34
    %v43 = vpop.permute.xlu0 %42
    %44 = vset.pattern.permute.xlu0 0
    %45 = vperm.xlu0 %44, %v35
    %v46 = vpop.permute.xlu0 %45
    %vm47 = vcmp.eq.s32.totalorder %v39, %v43
    %vm48 = vcmp.eq.s32.totalorder %v40, %v43
    %vm49 = vcmp.eq.s32.totalorder %v39, %v46
    %vm50 = vcmp.eq.s32.totalorder %v40, %v46
    %v51 = vsel %vm47, 1, 0
    %v52 = vsel %vm48, 1, 0
    %v53 = vsel %vm49, 1, 0
    %v54 = vsel %vm50, 1, 0
    %v55 = vcvt.s32.f32 %v51
    %v56 = vcvt.s32.f32 %v52
    %v57 = vcvt.s32.f32 %v53
    %v58 = vcvt.s32.f32 %v54
    %v59 = vpack.c.bf16 %v57, %v55
    %v60 = vpack.c.bf16 %v58, %v56
    %v61 = vld [vmem:[#allocation3] sm:$0xff]
    %v62 = vld [vmem:[#allocation3 + $0x8] sm:$0xf]
    %v63 = vld [vmem:[#allocation3 + $0xc] sm:$0xff]
    %v64 = vld [vmem:[#allocation3 + $0x14] sm:$0xf]
    %v65 = vld [vmem:[#allocation3 + $0x18] sm:$0xff]
    %v66 = vld [vmem:[#allocation3 + $0x20] sm:$0xf]
    %v67 = vld [vmem:[#allocation3 + $0x24] sm:$0xff]
    %v68 = vld [vmem:[#allocation3 + $0x2c] sm:$0xf]
    %v69 = vld [vmem:[#allocation3 + $0x30] sm:$0xff]
    %v70 = vld [vmem:[#allocation3 + $0x38] sm:$0xf]
    %v71 = vld [vmem:[#allocation3 + $0x3c] sm:$0xff]
    %v72 = vld [vmem:[#allocation3 + $0x44] sm:$0xf]
    %v73 = vld [vmem:[#allocation3 + $0x48] sm:$0xff]
    %v74 = vld [vmem:[#allocation3 + $0x50] sm:$0xf]
    %v75 = vld [vmem:[#allocation3 + $0x54] sm:$0xff]
    %v76 = vld [vmem:[#allocation3 + $0x5c] sm:$0xf]
    %v77 = vld [vmem:[#allocation3 + $0x60] sm:$0xff]
    %v78 = vld [vmem:[#allocation3 + $0x68] sm:$0xf]
    %v79 = vld [vmem:[#allocation3 + $0x6c] sm:$0xff]
    %v80 = vld [vmem:[#allocation3 + $0x74] sm:$0xf]
    %v81 = vld [vmem:[#allocation3 + $0x78] sm:$0xff]
    %v82 = vld [vmem:[#allocation3 + $0x80] sm:$0xf]
    %v83 = vld [vmem:[#allocation3 + $0x84] sm:$0xff]
    %v84 = vld [vmem:[#allocation3 + $0x8c] sm:$0xf]
    %v85 = vld [vmem:[#allocation3 + $0x90] sm:$0xff]
    %v86 = vld [vmem:[#allocation3 + $0x98] sm:$0xf]
    %v87 = vld [vmem:[#allocation3 + $0x9c] sm:$0xff]
    %v88 = vld [vmem:[#allocation3 + $0xa4] sm:$0xf]
    %v89 = vld [vmem:[#allocation3 + $0xa8] sm:$0xff]
    %v90 = vld [vmem:[#allocation3 + $0xb0] sm:$0xf]
    %v91 = vld [vmem:[#allocation3 + $0xb4] sm:$0xff]
    %v92 = vld [vmem:[#allocation3 + $0xbc] sm:$0xf]
    %v93 = vld [vmem:[#allocation3 + $0xc0] sm:$0xff]
    %v94 = vld [vmem:[#allocation3 + $0xc8] sm:$0xf]
    %v95 = vld [vmem:[#allocation3 + $0xcc] sm:$0xff]
    %v96 = vld [vmem:[#allocation3 + $0xd4] sm:$0xf]
    %v97 = vld [vmem:[#allocation3 + $0xd8] sm:$0xff]
    %v98 = vld [vmem:[#allocation3 + $0xe0] sm:$0xf]
    %v99 = vld [vmem:[#allocation3 + $0xe4] sm:$0xff]
    %v100 = vld [vmem:[#allocation3 + $0xec] sm:$0xf]
    %v101 = vld [vmem:[#allocation3 + $0xf0] sm:$0xff]
    %v102 = vld [vmem:[#allocation3 + $0xf8] sm:$0xf]
    %v103 = vld [vmem:[#allocation3 + $0xfc] sm:$0xff]
    %v104 = vld [vmem:[#allocation3 + $0x104] sm:$0xf]
    %v105 = vld [vmem:[#allocation3 + $0x108] sm:$0xff]
    %v106 = vld [vmem:[#allocation3 + $0x110] sm:$0xf]
    %v107 = vld [vmem:[#allocation3 + $0x114] sm:$0xff]
    %v108 = vld [vmem:[#allocation3 + $0x11c] sm:$0xf]
    %v109 = vld [vmem:[#allocation3 + $0x120] sm:$0xff]
    %v110 = vld [vmem:[#allocation3 + $0x128] sm:$0xf]
    %v111 = vld [vmem:[#allocation3 + $0x12c] sm:$0xff]
    %v112 = vld [vmem:[#allocation3 + $0x134] sm:$0xf]
    %v113 = vld [vmem:[#allocation3 + $0x138] sm:$0xff]
    %v114 = vld [vmem:[#allocation3 + $0x140] sm:$0xf]
    %v115 = vld [vmem:[#allocation3 + $0x144] sm:$0xff]
    %v116 = vld [vmem:[#allocation3 + $0x14c] sm:$0xf]
    %v117 = vld [vmem:[#allocation3 + $0x150] sm:$0xff]
    %v118 = vld [vmem:[#allocation3 + $0x158] sm:$0xf]
    %v119 = vld [vmem:[#allocation3 + $0x15c] sm:$0xff]
    %v120 = vld [vmem:[#allocation3 + $0x164] sm:$0xf]
    %v121 = vld [vmem:[#allocation3 + $0x168] sm:$0xff]
    %v122 = vld [vmem:[#allocation3 + $0x170] sm:$0xf]
    %v123 = vld [vmem:[#allocation3 + $0x174] sm:$0xff]
    %v124 = vld [vmem:[#allocation3 + $0x17c] sm:$0xf]
    %v189 = vunpack.c.l.b16 %v61
    %v190 = vunpack.c.h.b16 %v61
    %v191 = vunpack.c.l.b16 %v62
    %v192 = vunpack.c.l.b16 %v63
    %v193 = vunpack.c.h.b16 %v63
    %v194 = vunpack.c.l.b16 %v64
    %v195 = vunpack.c.l.b16 %v65
    %v196 = vunpack.c.h.b16 %v65
    %v197 = vunpack.c.l.b16 %v66
    %v198 = vunpack.c.l.b16 %v67
    %v199 = vunpack.c.h.b16 %v67
    %v200 = vunpack.c.l.b16 %v68
    %v201 = vunpack.c.l.b16 %v69
    %v202 = vunpack.c.h.b16 %v69
    %v203 = vunpack.c.l.b16 %v70
    %v204 = vunpack.c.l.b16 %v71
    %v205 = vunpack.c.h.b16 %v71
    %v206 = vunpack.c.l.b16 %v72
    %v207 = vunpack.c.l.b16 %v73
    %v208 = vunpack.c.h.b16 %v73
    %v209 = vunpack.c.l.b16 %v74
    %v210 = vunpack.c.l.b16 %v75
    %v211 = vunpack.c.h.b16 %v75
    %v212 = vunpack.c.l.b16 %v76
    %v213 = vunpack.c.l.b16 %v77
    %v214 = vunpack.c.h.b16 %v77
    %v215 = vunpack.c.l.b16 %v78
    %v216 = vunpack.c.l.b16 %v79
    %v217 = vunpack.c.h.b16 %v79
    %v218 = vunpack.c.l.b16 %v80
    %v219 = vunpack.c.l.b16 %v81
    %v220 = vunpack.c.h.b16 %v81
    %v221 = vunpack.c.l.b16 %v82
    %v222 = vunpack.c.l.b16 %v83
    %v223 = vunpack.c.h.b16 %v83
    %v224 = vunpack.c.l.b16 %v84
    %v225 = vunpack.c.l.b16 %v85
    %v226 = vunpack.c.h.b16 %v85
    %v227 = vunpack.c.l.b16 %v86
    %v228 = vunpack.c.l.b16 %v87
    %v229 = vunpack.c.h.b16 %v87
    %v230 = vunpack.c.l.b16 %v88
    %v231 = vunpack.c.l.b16 %v89
    %v232 = vunpack.c.h.b16 %v89
    %v233 = vunpack.c.l.b16 %v90
    %v234 = vunpack.c.l.b16 %v91
    %v235 = vunpack.c.h.b16 %v91
    %v236 = vunpack.c.l.b16 %v92
    %v237 = vunpack.c.l.b16 %v93
    %v238 = vunpack.c.h.b16 %v93
    %v239 = vunpack.c.l.b16 %v94
    %v240 = vunpack.c.l.b16 %v95
    %v241 = vunpack.c.h.b16 %v95
    %v242 = vunpack.c.l.b16 %v96
    %v243 = vunpack.c.l.b16 %v97
    %v244 = vunpack.c.h.b16 %v97
    %v245 = vunpack.c.l.b16 %v98
    %v246 = vunpack.c.l.b16 %v99
    %v247 = vunpack.c.h.b16 %v99
    %v248 = vunpack.c.l.b16 %v100
    %v249 = vunpack.c.l.b16 %v101
    %v250 = vunpack.c.h.b16 %v101
    %v251 = vunpack.c.l.b16 %v102
    %v252 = vunpack.c.l.b16 %v103
    %v253 = vunpack.c.h.b16 %v103
    %v254 = vunpack.c.l.b16 %v104
    %v255 = vunpack.c.l.b16 %v105
    %v256 = vunpack.c.h.b16 %v105
    %v257 = vunpack.c.l.b16 %v106
    %v258 = vunpack.c.l.b16 %v107
    %v259 = vunpack.c.h.b16 %v107
    %v260 = vunpack.c.l.b16 %v108
    %v261 = vunpack.c.l.b16 %v109
    %v262 = vunpack.c.h.b16 %v109
    %v263 = vunpack.c.l.b16 %v110
    %v264 = vunpack.c.l.b16 %v111
    %v265 = vunpack.c.h.b16 %v111
    %v266 = vunpack.c.l.b16 %v112
    %v267 = vunpack.c.l.b16 %v113
    %v268 = vunpack.c.h.b16 %v113
    %v269 = vunpack.c.l.b16 %v114
    %v270 = vunpack.c.l.b16 %v115
    %v271 = vunpack.c.h.b16 %v115
    %v272 = vunpack.c.l.b16 %v116
    %v273 = vunpack.c.l.b16 %v117
    %v274 = vunpack.c.h.b16 %v117
    %v275 = vunpack.c.l.b16 %v118
    %v276 = vunpack.c.l.b16 %v119
    %v277 = vunpack.c.h.b16 %v119
    %v278 = vunpack.c.l.b16 %v120
    %v279 = vunpack.c.l.b16 %v121
    %v280 = vunpack.c.h.b16 %v121
    %v281 = vunpack.c.l.b16 %v122
    %v282 = vunpack.c.l.b16 %v123
    %v283 = vunpack.c.h.b16 %v123
    %v284 = vunpack.c.l.b16 %v124
    %v285 = vpack.c.b16 %v192, %v189
    %v286 = vpack.c.b16 %v193, %v190
    %v287 = vpack.c.b16 %v194, %v191
    %v288 = vpack.c.b16 %v198, %v195
    %v289 = vpack.c.b16 %v199, %v196
    %v290 = vpack.c.b16 %v200, %v197
    %v291 = vpack.c.b16 %v204, %v201
    %v292 = vpack.c.b16 %v205, %v202
    %v293 = vpack.c.b16 %v206, %v203
    %v294 = vpack.c.b16 %v210, %v207
    %v295 = vpack.c.b16 %v211, %v208
    %v296 = vpack.c.b16 %v212, %v209
    %v297 = vpack.c.b16 %v216, %v213
    %v298 = vpack.c.b16 %v217, %v214
    %v299 = vpack.c.b16 %v218, %v215
    %v300 = vpack.c.b16 %v222, %v219
    %v301 = vpack.c.b16 %v223, %v220
    %v302 = vpack.c.b16 %v224, %v221
    %v303 = vpack.c.b16 %v228, %v225
    %v304 = vpack.c.b16 %v229, %v226
    %v305 = vpack.c.b16 %v230, %v227
    %v306 = vpack.c.b16 %v234, %v231
    %v307 = vpack.c.b16 %v235, %v232
    %v308 = vpack.c.b16 %v236, %v233
    %v309 = vpack.c.b16 %v240, %v237
    %v310 = vpack.c.b16 %v241, %v238
    %v311 = vpack.c.b16 %v242, %v239
    %v312 = vpack.c.b16 %v246, %v243
    %v313 = vpack.c.b16 %v247, %v244
    %v314 = vpack.c.b16 %v248, %v245
    %v315 = vpack.c.b16 %v252, %v249
    %v316 = vpack.c.b16 %v253, %v250
    %v317 = vpack.c.b16 %v254, %v251
    %v318 = vpack.c.b16 %v258, %v255
    %v319 = vpack.c.b16 %v259, %v256
    %v320 = vpack.c.b16 %v260, %v257
    %v321 = vpack.c.b16 %v264, %v261
    %v322 = vpack.c.b16 %v265, %v262
    %v323 = vpack.c.b16 %v266, %v263
    %v324 = vpack.c.b16 %v270, %v267
    %v325 = vpack.c.b16 %v271, %v268
    %v326 = vpack.c.b16 %v272, %v269
    %v327 = vpack.c.b16 %v276, %v273
    %v328 = vpack.c.b16 %v277, %v274
    %v329 = vpack.c.b16 %v278, %v275
    %v330 = vpack.c.b16 %v282, %v279
    %v331 = vpack.c.b16 %v283, %v280
    %v332 = vpack.c.b16 %v284, %v281
    %381 = vmatprep.subr.bf16.mxu0 %v286
    %382 = vmatpush1.bf16.msra.mxu0 %v285
    %383 = vmatprep.subr.bf16.mxu0 %v289
    %384 = vmatpush1.bf16.msra.mxu0 %v288
    %385 = vmatprep.subr.bf16.mxu0 %v292
    %386 = vmatpush1.bf16.msra.mxu0 %v291
    %387 = vmatprep.subr.bf16.mxu0 %v295
    %388 = vmatpush1.bf16.msra.mxu0 %v294
    %389 = vmatprep.subr.bf16.mxu0 %v298
    %390 = vmatpush1.bf16.msra.mxu0 %v297
    %391 = vmatprep.subr.bf16.mxu0 %v301
    %392 = vmatpush1.bf16.msra.mxu0 %v300
    %393 = vmatprep.subr.bf16.mxu0 %v304
    %394 = vmatpush1.bf16.msra.mxu0 %v303
    %395 = vmatprep.subr.bf16.mxu0 %v307
    %396 = vmatpush1.bf16.msra.mxu0 %v306
    %397 = vmatprep.subr.bf16.mxu0 %v310
    %398 = vmatpush1.bf16.msra.mxu0 %v309
    %399 = vmatprep.subr.bf16.mxu0 %v313
    %400 = vmatpush1.bf16.msra.mxu0 %v312
    %401 = vmatprep.subr.bf16.mxu0 %v316
    %402 = vmatpush1.bf16.msra.mxu0 %v315
    %403 = vmatprep.subr.bf16.mxu0 %v319
    %404 = vmatpush1.bf16.msra.mxu0 %v318
    %405 = vmatprep.subr.bf16.mxu0 %v322
    %406 = vmatpush1.bf16.msra.mxu0 %v321
    %407 = vmatprep.subr.bf16.mxu0 %v325
    %408 = vmatpush1.bf16.msra.mxu0 %v324
    %409 = vmatprep.subr.bf16.mxu0 %v328
    %410 = vmatpush1.bf16.msra.mxu0 %v327
    %411 = vmatprep.subr.bf16.mxu0 %v331
    %412 = vmatpush1.bf16.msra.mxu0 %v330
    %413 = vmatprep.mubr.bf16.mxu0 %v60
    %414 = vmatmul.mubr.bf16.gmra.mrb[0].mxu0 %v59
    %v415 = vpop.f32.mrb[0].mxu0
    %v416 = vadd.f32 0.0, %v415
    %v417 = vpop.f32.mrb[0].mxu0
    %v418 = vadd.f32 0.0, %v417
    %v419 = vpop.f32.mrb[0].mxu0
    %v420 = vadd.f32 0.0, %v419
    %v421 = vpop.f32.mrb[0].mxu0
    %v422 = vadd.f32 0.0, %v421
    %423 = vdwg.mxu0
    %424 = vmatprep.subr.bf16.mxu0 0
    %425 = vmatpush1.bf16.msra.mxu0 %v287
    %426 = vmatprep.subr.bf16.mxu0 0
    %427 = vmatpush1.bf16.msra.mxu0 %v290
    %428 = vmatprep.subr.bf16.mxu0 0
    %429 = vmatpush1.bf16.msra.mxu0 %v293
    %430 = vmatprep.subr.bf16.mxu0 0
    %431 = vmatpush1.bf16.msra.mxu0 %v296
    %432 = vmatprep.subr.bf16.mxu0 0
    %433 = vmatpush1.bf16.msra.mxu0 %v299
    %434 = vmatprep.subr.bf16.mxu0 0
    %435 = vmatpush1.bf16.msra.mxu0 %v302
    %436 = vmatprep.subr.bf16.mxu0 0
    %437 = vmatpush1.bf16.msra.mxu0 %v305
    %438 = vmatprep.subr.bf16.mxu0 0
    %439 = vmatpush1.bf16.msra.mxu0 %v308
    %440 = vmatprep.subr.bf16.mxu0 0
    %441 = vmatpush1.bf16.msra.mxu0 %v311
    %442 = vmatprep.subr.bf16.mxu0 0
    %443 = vmatpush1.bf16.msra.mxu0 %v314
    %444 = vmatprep.subr.bf16.mxu0 0
    %445 = vmatpush1.bf16.msra.mxu0 %v317
    %446 = vmatprep.subr.bf16.mxu0 0
    %447 = vmatpush1.bf16.msra.mxu0 %v320
    %448 = vmatprep.subr.bf16.mxu0 0
    %449 = vmatpush1.bf16.msra.mxu0 %v323
    %450 = vmatprep.subr.bf16.mxu0 0
    %451 = vmatpush1.bf16.msra.mxu0 %v326
    %452 = vmatprep.subr.bf16.mxu0 0
    %453 = vmatpush1.bf16.msra.mxu0 %v329
    %454 = vmatprep.subr.bf16.mxu0 0
    %455 = vmatpush1.bf16.msra.mxu0 %v332
    %456 = vmatprep.mubr.bf16.mxu0 %v60
    %457 = vmatmul.mubr.bf16.gmra.mrb[0].mxu0 %v59
    %v458 = vpop.f32.mrb[0].mxu0
    %v459 = vadd.f32 0.0, %v458
    %v460 = vpop.f32.mrb[0].mxu0
    %v461 = vpop.f32.mrb[0].mxu0
    %v462 = vadd.f32 0.0, %v461
    %v463 = vpop.f32.mrb[0].mxu0
    %464 = vdwg.mxu0
    %v465 = vpack.c.bf16 %v420, %v416
    %v466 = vpack.c.bf16 %v422, %v418
    %v467 = vpack.c.bf16 %v462, %v459
    %v468 = vld [vmem:[#allocation3 + $0x180] sm:$0xff]
    %v469 = vld [vmem:[#allocation3 + $0x188] sm:$0xf]
    %v470 = vld [vmem:[#allocation3 + $0x18c] sm:$0xff]
    %v471 = vld [vmem:[#allocation3 + $0x194] sm:$0xf]
    %v472 = vld [vmem:[#allocation3 + $0x198] sm:$0xff]
    %v473 = vld [vmem:[#allocation3 + $0x1a0] sm:$0xf]
    %v474 = vld [vmem:[#allocation3 + $0x1a4] sm:$0xff]
    %v475 = vld [vmem:[#allocation3 + $0x1ac] sm:$0xf]
    %v476 = vld [vmem:[#allocation3 + $0x1b0] sm:$0xff]
    %v477 = vld [vmem:[#allocation3 + $0x1b8] sm:$0xf]
    %v478 = vld [vmem:[#allocation3 + $0x1bc] sm:$0xff]
    %v479 = vld [vmem:[#allocation3 + $0x1c4] sm:$0xf]
    %v480 = vld [vmem:[#allocation3 + $0x1c8] sm:$0xff]
    %v481 = vld [vmem:[#allocation3 + $0x1d0] sm:$0xf]
    %v482 = vld [vmem:[#allocation3 + $0x1d4] sm:$0xff]
    %v483 = vld [vmem:[#allocation3 + $0x1dc] sm:$0xf]
    %v484 = vld [vmem:[#allocation3 + $0x1e0] sm:$0xff]
    %v485 = vld [vmem:[#allocation3 + $0x1e8] sm:$0xf]
    %v486 = vld [vmem:[#allocation3 + $0x1ec] sm:$0xff]
    %v487 = vld [vmem:[#allocation3 + $0x1f4] sm:$0xf]
    %v488 = vld [vmem:[#allocation3 + $0x1f8] sm:$0xff]
    %v489 = vld [vmem:[#allocation3 + $0x200] sm:$0xf]
    %v490 = vld [vmem:[#allocation3 + $0x204] sm:$0xff]
    %v491 = vld [vmem:[#allocation3 + $0x20c] sm:$0xf]
    %v492 = vld [vmem:[#allocation3 + $0x210] sm:$0xff]
    %v493 = vld [vmem:[#allocation3 + $0x218] sm:$0xf]
    %v494 = vld [vmem:[#allocation3 + $0x21c] sm:$0xff]
    %v495 = vld [vmem:[#allocation3 + $0x224] sm:$0xf]
    %v496 = vld [vmem:[#allocation3 + $0x228] sm:$0xff]
    %v497 = vld [vmem:[#allocation3 + $0x230] sm:$0xf]
    %v498 = vld [vmem:[#allocation3 + $0x234] sm:$0xff]
    %v499 = vld [vmem:[#allocation3 + $0x23c] sm:$0xf]
    %v500 = vld [vmem:[#allocation3 + $0x240] sm:$0xff]
    %v501 = vld [vmem:[#allocation3 + $0x248] sm:$0xf]
    %v502 = vld [vmem:[#allocation3 + $0x24c] sm:$0xff]
    %v503 = vld [vmem:[#allocation3 + $0x254] sm:$0xf]
    %v504 = vld [vmem:[#allocation3 + $0x258] sm:$0xff]
    %v505 = vld [vmem:[#allocation3 + $0x260] sm:$0xf]
    %v506 = vld [vmem:[#allocation3 + $0x264] sm:$0xff]
    %v507 = vld [vmem:[#allocation3 + $0x26c] sm:$0xf]
    %v508 = vld [vmem:[#allocation3 + $0x270] sm:$0xff]
    %v509 = vld [vmem:[#allocation3 + $0x278] sm:$0xf]
    %v510 = vld [vmem:[#allocation3 + $0x27c] sm:$0xff]
    %v511 = vld [vmem:[#allocation3 + $0x284] sm:$0xf]
    %v512 = vld [vmem:[#allocation3 + $0x288] sm:$0xff]
    %v513 = vld [vmem:[#allocation3 + $0x290] sm:$0xf]
    %v514 = vld [vmem:[#allocation3 + $0x294] sm:$0xff]
    %v515 = vld [vmem:[#allocation3 + $0x29c] sm:$0xf]
    %v516 = vld [vmem:[#allocation3 + $0x2a0] sm:$0xff]
    %v517 = vld [vmem:[#allocation3 + $0x2a8] sm:$0xf]
    %v518 = vld [vmem:[#allocation3 + $0x2ac] sm:$0xff]
    %v519 = vld [vmem:[#allocation3 + $0x2b4] sm:$0xf]
    %v520 = vld [vmem:[#allocation3 + $0x2b8] sm:$0xff]
    %v521 = vld [vmem:[#allocation3 + $0x2c0] sm:$0xf]
    %v522 = vld [vmem:[#allocation3 + $0x2c4] sm:$0xff]
    %v523 = vld [vmem:[#allocation3 + $0x2cc] sm:$0xf]
    %v524 = vld [vmem:[#allocation3 + $0x2d0] sm:$0xff]
    %v525 = vld [vmem:[#allocation3 + $0x2d8] sm:$0xf]
    %v526 = vld [vmem:[#allocation3 + $0x2dc] sm:$0xff]
    %v527 = vld [vmem:[#allocation3 + $0x2e4] sm:$0xf]
    %v528 = vld [vmem:[#allocation3 + $0x2e8] sm:$0xff]
    %v529 = vld [vmem:[#allocation3 + $0x2f0] sm:$0xf]
    %v530 = vld [vmem:[#allocation3 + $0x2f4] sm:$0xff]
    %v531 = vld [vmem:[#allocation3 + $0x2fc] sm:$0xf]
    %v532 = vld [vmem:[#allocation3 + $0x300] sm:$0xff]
    %v533 = vld [vmem:[#allocation3 + $0x308] sm:$0xf]
    %v534 = vld [vmem:[#allocation3 + $0x30c] sm:$0xff]
    %v535 = vld [vmem:[#allocation3 + $0x314] sm:$0xf]
    %v536 = vld [vmem:[#allocation3 + $0x318] sm:$0xff]
    %v537 = vld [vmem:[#allocation3 + $0x320] sm:$0xf]
    %v538 = vld [vmem:[#allocation3 + $0x324] sm:$0xff]
    %v539 = vld [vmem:[#allocation3 + $0x32c] sm:$0xf]
    %v540 = vld [vmem:[#allocation3 + $0x330] sm:$0xff]
    %v541 = vld [vmem:[#allocation3 + $0x338] sm:$0xf]
    %v542 = vld [vmem:[#allocation3 + $0x33c] sm:$0xff]
    %v543 = vld [vmem:[#allocation3 + $0x344] sm:$0xf]
    %v544 = vld [vmem:[#allocation3 + $0x348] sm:$0xff]
    %v545 = vld [vmem:[#allocation3 + $0x350] sm:$0xf]
    %v546 = vld [vmem:[#allocation3 + $0x354] sm:$0xff]
    %v547 = vld [vmem:[#allocation3 + $0x35c] sm:$0xf]
    %v548 = vld [vmem:[#allocation3 + $0x360] sm:$0xff]
    %v549 = vld [vmem:[#allocation3 + $0x368] sm:$0xf]
    %v550 = vld [vmem:[#allocation3 + $0x36c] sm:$0xff]
    %v551 = vld [vmem:[#allocation3 + $0x374] sm:$0xf]
    %v552 = vld [vmem:[#allocation3 + $0x378] sm:$0xff]
    %v553 = vld [vmem:[#allocation3 + $0x380] sm:$0xf]
    %v554 = vld [vmem:[#allocation3 + $0x384] sm:$0xff]
    %v555 = vld [vmem:[#allocation3 + $0x38c] sm:$0xf]
    %v556 = vld [vmem:[#allocation3 + $0x390] sm:$0xff]
    %v557 = vld [vmem:[#allocation3 + $0x398] sm:$0xf]
    %v558 = vld [vmem:[#allocation3 + $0x39c] sm:$0xff]
    %v559 = vld [vmem:[#allocation3 + $0x3a4] sm:$0xf]
    %v560 = vld [vmem:[#allocation3 + $0x3a8] sm:$0xff]
    %v561 = vld [vmem:[#allocation3 + $0x3b0] sm:$0xf]
    %v562 = vld [vmem:[#allocation3 + $0x3b4] sm:$0xff]
    %v563 = vld [vmem:[#allocation3 + $0x3bc] sm:$0xf]
    %v564 = vld [vmem:[%s2] sm:$0x7]
    %v566 = vlaneseq
    %v567 = vshrl.u32 %v566, 7
    %v568 = vsub.s32 0, %v567
    %v569 = vrot.slane %v564, %v568
    %v570 = vlaneseq
    %v571 = vshrl.u32 %v570, 7
    %v572 = vsub.s32 1, %v571
    %v573 = vrot.slane %v564, %v572
    %v574 = vlaneseq
    %v575 = vshrl.u32 %v574, 7
    %v576 = vsub.s32 2, %v575
    %v577 = vrot.slane %v564, %v576
    %v677 = vunpack.c.l.b16 %v468
    %v678 = vunpack.c.h.b16 %v468
    %v679 = vunpack.c.l.b16 %v469
    %v680 = vunpack.c.l.b16 %v470
    %v681 = vunpack.c.h.b16 %v470
    %v682 = vunpack.c.l.b16 %v471
    %v683 = vunpack.c.l.b16 %v472
    %v684 = vunpack.c.h.b16 %v472
    %v685 = vunpack.c.l.b16 %v473
    %v686 = vunpack.c.l.b16 %v474
    %v687 = vunpack.c.h.b16 %v474
    %v688 = vunpack.c.l.b16 %v475
    %v689 = vunpack.c.l.b16 %v476
    %v690 = vunpack.c.h.b16 %v476
    %v691 = vunpack.c.l.b16 %v477
    %v692 = vunpack.c.l.b16 %v478
    %v693 = vunpack.c.h.b16 %v478
    %v694 = vunpack.c.l.b16 %v479
    %v695 = vunpack.c.l.b16 %v480
    %v696 = vunpack.c.h.b16 %v480
    %v697 = vunpack.c.l.b16 %v481
    %v698 = vunpack.c.l.b16 %v482
    %v699 = vunpack.c.h.b16 %v482
    %v700 = vunpack.c.l.b16 %v483
    %v701 = vunpack.c.l.b16 %v484
    %v702 = vunpack.c.h.b16 %v484
    %v703 = vunpack.c.l.b16 %v485
    %v704 = vunpack.c.l.b16 %v486
    %v705 = vunpack.c.h.b16 %v486
    %v706 = vunpack.c.l.b16 %v487
    %v707 = vunpack.c.l.b16 %v488
    %v708 = vunpack.c.h.b16 %v488
    %v709 = vunpack.c.l.b16 %v489
    %v710 = vunpack.c.l.b16 %v490
    %v711 = vunpack.c.h.b16 %v490
    %v712 = vunpack.c.l.b16 %v491
    %v713 = vunpack.c.l.b16 %v492
    %v714 = vunpack.c.h.b16 %v492
    %v715 = vunpack.c.l.b16 %v493
    %v716 = vunpack.c.l.b16 %v494
    %v717 = vunpack.c.h.b16 %v494
    %v718 = vunpack.c.l.b16 %v495
    %v719 = vunpack.c.l.b16 %v496
    %v720 = vunpack.c.h.b16 %v496
    %v721 = vunpack.c.l.b16 %v497
    %v722 = vunpack.c.l.b16 %v498
    %v723 = vunpack.c.h.b16 %v498
    %v724 = vunpack.c.l.b16 %v499
    %v725 = vunpack.c.l.b16 %v500
    %v726 = vunpack.c.h.b16 %v500
    %v727 = vunpack.c.l.b16 %v501
    %v728 = vunpack.c.l.b16 %v502
    %v729 = vunpack.c.h.b16 %v502
    %v730 = vunpack.c.l.b16 %v503
    %v731 = vunpack.c.l.b16 %v504
    %v732 = vunpack.c.h.b16 %v504
    %v733 = vunpack.c.l.b16 %v505
    %v734 = vunpack.c.l.b16 %v506
    %v735 = vunpack.c.h.b16 %v506
    %v736 = vunpack.c.l.b16 %v507
    %v737 = vunpack.c.l.b16 %v508
    %v738 = vunpack.c.h.b16 %v508
    %v739 = vunpack.c.l.b16 %v509
    %v740 = vunpack.c.l.b16 %v510
    %v741 = vunpack.c.h.b16 %v510
    %v742 = vunpack.c.l.b16 %v511
    %v743 = vunpack.c.l.b16 %v512
    %v744 = vunpack.c.h.b16 %v512
    %v745 = vunpack.c.l.b16 %v513
    %v746 = vunpack.c.l.b16 %v514
    %v747 = vunpack.c.h.b16 %v514
    %v748 = vunpack.c.l.b16 %v515
    %v749 = vunpack.c.l.b16 %v516
    %v750 = vunpack.c.h.b16 %v516
    %v751 = vunpack.c.l.b16 %v517
    %v752 = vunpack.c.l.b16 %v518
    %v753 = vunpack.c.h.b16 %v518
    %v754 = vunpack.c.l.b16 %v519
    %v755 = vunpack.c.l.b16 %v520
    %v756 = vunpack.c.h.b16 %v520
    %v757 = vunpack.c.l.b16 %v521
    %v758 = vunpack.c.l.b16 %v522
    %v759 = vunpack.c.h.b16 %v522
    %v760 = vunpack.c.l.b16 %v523
    %v761 = vunpack.c.l.b16 %v524
    %v762 = vunpack.c.h.b16 %v524
    %v763 = vunpack.c.l.b16 %v525
    %v764 = vunpack.c.l.b16 %v526
    %v765 = vunpack.c.h.b16 %v526
    %v766 = vunpack.c.l.b16 %v527
    %v767 = vunpack.c.l.b16 %v528
    %v768 = vunpack.c.h.b16 %v528
    %v769 = vunpack.c.l.b16 %v529
    %v770 = vunpack.c.l.b16 %v530
    %v771 = vunpack.c.h.b16 %v530
    %v772 = vunpack.c.l.b16 %v531
    %v773 = vunpack.c.l.b16 %v532
    %v774 = vunpack.c.h.b16 %v532
    %v775 = vunpack.c.l.b16 %v533
    %v776 = vunpack.c.l.b16 %v534
    %v777 = vunpack.c.h.b16 %v534
    %v778 = vunpack.c.l.b16 %v535
    %v779 = vunpack.c.l.b16 %v536
    %v780 = vunpack.c.h.b16 %v536
    %v781 = vunpack.c.l.b16 %v537
    %v782 = vunpack.c.l.b16 %v538
    %v783 = vunpack.c.h.b16 %v538
    %v784 = vunpack.c.l.b16 %v539
    %v785 = vunpack.c.l.b16 %v540
    %v786 = vunpack.c.h.b16 %v540
    %v787 = vunpack.c.l.b16 %v541
    %v788 = vunpack.c.l.b16 %v542
    %v789 = vunpack.c.h.b16 %v542
    %v790 = vunpack.c.l.b16 %v543
    %v791 = vunpack.c.l.b16 %v544
    %v792 = vunpack.c.h.b16 %v544
    %v793 = vunpack.c.l.b16 %v545
    %v794 = vunpack.c.l.b16 %v546
    %v795 = vunpack.c.h.b16 %v546
    %v796 = vunpack.c.l.b16 %v547
    %v797 = vunpack.c.l.b16 %v548
    %v798 = vunpack.c.h.b16 %v548
    %v799 = vunpack.c.l.b16 %v549
    %v800 = vunpack.c.l.b16 %v550
    %v801 = vunpack.c.h.b16 %v550
    %v802 = vunpack.c.l.b16 %v551
    %v803 = vunpack.c.l.b16 %v552
    %v804 = vunpack.c.h.b16 %v552
    %v805 = vunpack.c.l.b16 %v553
    %v806 = vunpack.c.l.b16 %v554
    %v807 = vunpack.c.h.b16 %v554
    %v808 = vunpack.c.l.b16 %v555
    %v809 = vunpack.c.l.b16 %v556
    %v810 = vunpack.c.h.b16 %v556
    %v811 = vunpack.c.l.b16 %v557
    %v812 = vunpack.c.l.b16 %v558
    %v813 = vunpack.c.h.b16 %v558
    %v814 = vunpack.c.l.b16 %v559
    %v815 = vunpack.c.l.b16 %v560
    %v816 = vunpack.c.h.b16 %v560
    %v817 = vunpack.c.l.b16 %v561
    %v818 = vunpack.c.l.b16 %v562
    %v819 = vunpack.c.h.b16 %v562
    %v820 = vunpack.c.l.b16 %v563
    %v821 = vpack.c.b16 %v680, %v677
    %v822 = vpack.c.b16 %v681, %v678
    %v823 = vpack.c.b16 %v682, %v679
    %v824 = vpack.c.b16 %v686, %v683
    %v825 = vpack.c.b16 %v687, %v684
    %v826 = vpack.c.b16 %v688, %v685
    %v827 = vpack.c.b16 %v692, %v689
    %v828 = vpack.c.b16 %v693, %v690
    %v829 = vpack.c.b16 %v694, %v691
    %v830 = vpack.c.b16 %v698, %v695
    %v831 = vpack.c.b16 %v699, %v696
    %v832 = vpack.c.b16 %v700, %v697
    %v833 = vpack.c.b16 %v704, %v701
    %v834 = vpack.c.b16 %v705, %v702
    %v835 = vpack.c.b16 %v706, %v703
    %v836 = vpack.c.b16 %v710, %v707
    %v837 = vpack.c.b16 %v711, %v708
    %v838 = vpack.c.b16 %v712, %v709
    %v839 = vpack.c.b16 %v716, %v713
    %v840 = vpack.c.b16 %v717, %v714
    %v841 = vpack.c.b16 %v718, %v715
    %v842 = vpack.c.b16 %v722, %v719
    %v843 = vpack.c.b16 %v723, %v720
    %v844 = vpack.c.b16 %v724, %v721
    %v845 = vpack.c.b16 %v728, %v725
    %v846 = vpack.c.b16 %v729, %v726
    %v847 = vpack.c.b16 %v730, %v727
    %v848 = vpack.c.b16 %v734, %v731
    %v849 = vpack.c.b16 %v735, %v732
    %v850 = vpack.c.b16 %v736, %v733
    %v851 = vpack.c.b16 %v740, %v737
    %v852 = vpack.c.b16 %v741, %v738
    %v853 = vpack.c.b16 %v742, %v739
    %v854 = vpack.c.b16 %v746, %v743
    %v855 = vpack.c.b16 %v747, %v744
    %v856 = vpack.c.b16 %v748, %v745
    %v857 = vpack.c.b16 %v752, %v749
    %v858 = vpack.c.b16 %v753, %v750
    %v859 = vpack.c.b16 %v754, %v751
    %v860 = vpack.c.b16 %v758, %v755
    %v861 = vpack.c.b16 %v759, %v756
    %v862 = vpack.c.b16 %v760, %v757
    %v863 = vpack.c.b16 %v764, %v761
    %v864 = vpack.c.b16 %v765, %v762
    %v865 = vpack.c.b16 %v766, %v763
    %v866 = vpack.c.b16 %v770, %v767
    %v867 = vpack.c.b16 %v771, %v768
    %v868 = vpack.c.b16 %v772, %v769
    %v869 = vpack.c.b16 %v776, %v773
    %v870 = vpack.c.b16 %v777, %v774
    %v871 = vpack.c.b16 %v778, %v775
    %v872 = vpack.c.b16 %v782, %v779
    %v873 = vpack.c.b16 %v783, %v780
    %v874 = vpack.c.b16 %v784, %v781
    %v875 = vpack.c.b16 %v788, %v785
    %v876 = vpack.c.b16 %v789, %v786
    %v877 = vpack.c.b16 %v790, %v787
    %v878 = vpack.c.b16 %v794, %v791
    %v879 = vpack.c.b16 %v795, %v792
    %v880 = vpack.c.b16 %v796, %v793
    %v881 = vpack.c.b16 %v800, %v797
    %v882 = vpack.c.b16 %v801, %v798
    %v883 = vpack.c.b16 %v802, %v799
    %v884 = vpack.c.b16 %v806, %v803
    %v885 = vpack.c.b16 %v807, %v804
    %v886 = vpack.c.b16 %v808, %v805
    %v887 = vpack.c.b16 %v812, %v809
    %v888 = vpack.c.b16 %v813, %v810
    %v889 = vpack.c.b16 %v814, %v811
    %v890 = vpack.c.b16 %v818, %v815
    %v891 = vpack.c.b16 %v819, %v816
    %v892 = vpack.c.b16 %v820, %v817
    %965 = vmatprep.subr.bf16.mxu0 %v822
    %966 = vmatpush1.bf16.msra.mxu0 %v821
    %967 = vmatprep.subr.bf16.mxu0 %v825
    %968 = vmatpush1.bf16.msra.mxu0 %v824
    %969 = vmatprep.subr.bf16.mxu0 %v828
    %970 = vmatpush1.bf16.msra.mxu0 %v827
    %971 = vmatprep.subr.bf16.mxu0 %v831
    %972 = vmatpush1.bf16.msra.mxu0 %v830
    %973 = vmatprep.subr.bf16.mxu0 %v834
    %974 = vmatpush1.bf16.msra.mxu0 %v833
    %975 = vmatprep.subr.bf16.mxu0 %v837
    %976 = vmatpush1.bf16.msra.mxu0 %v836
    %977 = vmatprep.subr.bf16.mxu0 %v840
    %978 = vmatpush1.bf16.msra.mxu0 %v839
    %979 = vmatprep.subr.bf16.mxu0 %v843
    %980 = vmatpush1.bf16.msra.mxu0 %v842
    %981 = vmatprep.subr.bf16.mxu0 %v846
    %982 = vmatpush1.bf16.msra.mxu0 %v845
    %983 = vmatprep.subr.bf16.mxu0 %v849
    %984 = vmatpush1.bf16.msra.mxu0 %v848
    %985 = vmatprep.subr.bf16.mxu0 %v852
    %986 = vmatpush1.bf16.msra.mxu0 %v851
    %987 = vmatprep.subr.bf16.mxu0 %v855
    %988 = vmatpush1.bf16.msra.mxu0 %v854
    %989 = vmatprep.subr.bf16.mxu0 %v858
    %990 = vmatpush1.bf16.msra.mxu0 %v857
    %991 = vmatprep.subr.bf16.mxu0 %v861
    %992 = vmatpush1.bf16.msra.mxu0 %v860
    %993 = vmatprep.subr.bf16.mxu0 %v864
    %994 = vmatpush1.bf16.msra.mxu0 %v863
    %995 = vmatprep.subr.bf16.mxu0 %v867
    %996 = vmatpush1.bf16.msra.mxu0 %v866
    %997 = vmatprep.mubr.bf16.mxu0 %v466
    %998 = vmatmul.mubr.bf16.gmra.mrb[0].mxu0 %v465
    %v999 = vpop.f32.mrb[0].mxu0
    %v1000 = vadd.f32 %v569, %v999
    %v1001 = vpop.f32.mrb[0].mxu0
    %v1002 = vadd.f32 %v573, %v1001
    %v1003 = vpop.f32.mrb[0].mxu0
    %v1004 = vadd.f32 %v569, %v1003
    %v1005 = vpop.f32.mrb[0].mxu0
    %v1006 = vadd.f32 %v573, %v1005
    %1007 = vdwg.mxu0
    %1008 = vmatprep.subr.bf16.mxu0 %v870
    %1009 = vmatpush1.bf16.msra.mxu0 %v869
    %1010 = vmatprep.subr.bf16.mxu0 %v873
    %1011 = vmatpush1.bf16.msra.mxu0 %v872
    %1012 = vmatprep.subr.bf16.mxu0 %v876
    %1013 = vmatpush1.bf16.msra.mxu0 %v875
    %1014 = vmatprep.subr.bf16.mxu0 %v879
    %1015 = vmatpush1.bf16.msra.mxu0 %v878
    %1016 = vmatprep.subr.bf16.mxu0 %v882
    %1017 = vmatpush1.bf16.msra.mxu0 %v881
    %1018 = vmatprep.subr.bf16.mxu0 %v885
    %1019 = vmatpush1.bf16.msra.mxu0 %v884
    %1020 = vmatprep.subr.bf16.mxu0 %v888
    %1021 = vmatpush1.bf16.msra.mxu0 %v887
    %1022 = vmatprep.subr.bf16.mxu0 %v891
    %1023 = vmatpush1.bf16.msra.mxu0 %v890
    %1024 = vmatprep.subr.bf16.mxu0 0
    %1025 = vmatpush1.bf16.msra.mxu0 0
    %1026 = vmatprep.subr.bf16.mxu0 0
    %1027 = vmatpush1.bf16.msra.mxu0 0
    %1028 = vmatprep.subr.bf16.mxu0 0
    %1029 = vmatpush1.bf16.msra.mxu0 0
    %1030 = vmatprep.subr.bf16.mxu0 0
    %1031 = vmatpush1.bf16.msra.mxu0 0
    %1032 = vmatprep.subr.bf16.mxu0 0
    %1033 = vmatpush1.bf16.msra.mxu0 0
    %1034 = vmatprep.subr.bf16.mxu0 0
    %1035 = vmatpush1.bf16.msra.mxu0 0
    %1036 = vmatprep.subr.bf16.mxu0 0
    %1037 = vmatpush1.bf16.msra.mxu0 0
    %1038 = vmatprep.subr.bf16.mxu0 0
    %1039 = vmatpush1.bf16.msra.mxu0 0
    %1040 = vmatprep.mubr.bf16.mxu0 0
    %1041 = vmatmul.mubr.bf16.gmra.mrb[0].mxu0 %v467
    %v1042 = vpop.f32.mrb[0].mxu0
    %v1043 = vadd.f32 %v1000, %v1042
    %v1044 = vpop.f32.mrb[0].mxu0
    %v1045 = vadd.f32 %v1002, %v1044
    %v1046 = vpop.f32.mrb[0].mxu0
    %v1047 = vadd.f32 %v1004, %v1046
    %v1048 = vpop.f32.mrb[0].mxu0
    %v1049 = vadd.f32 %v1006, %v1048
    %1050 = vdwg.mxu0
    %1051 = vmatprep.subr.bf16.mxu0 0
    %1052 = vmatpush1.bf16.msra.mxu0 %v823
    %1053 = vmatprep.subr.bf16.mxu0 0
    %1054 = vmatpush1.bf16.msra.mxu0 %v826
    %1055 = vmatprep.subr.bf16.mxu0 0
    %1056 = vmatpush1.bf16.msra.mxu0 %v829
    %1057 = vmatprep.subr.bf16.mxu0 0
    %1058 = vmatpush1.bf16.msra.mxu0 %v832
    %1059 = vmatprep.subr.bf16.mxu0 0
    %1060 = vmatpush1.bf16.msra.mxu0 %v835
    %1061 = vmatprep.subr.bf16.mxu0 0
    %1062 = vmatpush1.bf16.msra.mxu0 %v838
    %1063 = vmatprep.subr.bf16.mxu0 0
    %1064 = vmatpush1.bf16.msra.mxu0 %v841
    %1065 = vmatprep.subr.bf16.mxu0 0
    %1066 = vmatpush1.bf16.msra.mxu0 %v844
    %1067 = vmatprep.subr.bf16.mxu0 0
    %1068 = vmatpush1.bf16.msra.mxu0 %v847
    %1069 = vmatprep.subr.bf16.mxu0 0
    %1070 = vmatpush1.bf16.msra.mxu0 %v850
    %1071 = vmatprep.subr.bf16.mxu0 0
    %1072 = vmatpush1.bf16.msra.mxu0 %v853
    %1073 = vmatprep.subr.bf16.mxu0 0
    %1074 = vmatpush1.bf16.msra.mxu0 %v856
    %1075 = vmatprep.subr.bf16.mxu0 0
    %1076 = vmatpush1.bf16.msra.mxu0 %v859
    %1077 = vmatprep.subr.bf16.mxu0 0
    %1078 = vmatpush1.bf16.msra.mxu0 %v862
    %1079 = vmatprep.subr.bf16.mxu0 0
    %1080 = vmatpush1.bf16.msra.mxu0 %v865
    %1081 = vmatprep.subr.bf16.mxu0 0
    %1082 = vmatpush1.bf16.msra.mxu0 %v868
    %1083 = vmatprep.mubr.bf16.mxu0 %v466
    %1084 = vmatmul.mubr.bf16.gmra.mrb[0].mxu0 %v465
    %v1085 = vpop.f32.mrb[0].mxu0
    %v1086 = vadd.f32 %v577, %v1085
    %v1087 = vpop.f32.mrb[0].mxu0
    %v1088 = vpop.f32.mrb[0].mxu0
    %v1089 = vadd.f32 %v577, %v1088
    %v1090 = vpop.f32.mrb[0].mxu0
    %1091 = vdwg.mxu0
    %1092 = vmatprep.subr.bf16.mxu0 0
    %1093 = vmatpush1.bf16.msra.mxu0 %v871
    %1094 = vmatprep.subr.bf16.mxu0 0
    %1095 = vmatpush1.bf16.msra.mxu0 %v874
    %1096 = vmatprep.subr.bf16.mxu0 0
    %1097 = vmatpush1.bf16.msra.mxu0 %v877
    %1098 = vmatprep.subr.bf16.mxu0 0
    %1099 = vmatpush1.bf16.msra.mxu0 %v880
    %1100 = vmatprep.subr.bf16.mxu0 0
    %1101 = vmatpush1.bf16.msra.mxu0 %v883
    %1102 = vmatprep.subr.bf16.mxu0 0
    %1103 = vmatpush1.bf16.msra.mxu0 %v886
    %1104 = vmatprep.subr.bf16.mxu0 0
    %1105 = vmatpush1.bf16.msra.mxu0 %v889
    %1106 = vmatprep.subr.bf16.mxu0 0
    %1107 = vmatpush1.bf16.msra.mxu0 %v892
    %1108 = vmatprep.subr.bf16.mxu0 0
    %1109 = vmatpush1.bf16.msra.mxu0 0
    %1110 = vmatprep.subr.bf16.mxu0 0
    %1111 = vmatpush1.bf16.msra.mxu0 0
    %1112 = vmatprep.subr.bf16.mxu0 0
    %1113 = vmatpush1.bf16.msra.mxu0 0
    %1114 = vmatprep.subr.bf16.mxu0 0
    %1115 = vmatpush1.bf16.msra.mxu0 0
    %1116 = vmatprep.subr.bf16.mxu0 0
    %1117 = vmatpush1.bf16.msra.mxu0 0
    %1118 = vmatprep.subr.bf16.mxu0 0
    %1119 = vmatpush1.bf16.msra.mxu0 0
    %1120 = vmatprep.subr.bf16.mxu0 0
    %1121 = vmatpush1.bf16.msra.mxu0 0
    %1122 = vmatprep.subr.bf16.mxu0 0
    %1123 = vmatpush1.bf16.msra.mxu0 0
    %1124 = vmatprep.mubr.bf16.mxu0 0
    %1125 = vmatmul.mubr.bf16.gmra.mrb[0].mxu0 %v467
    %v1126 = vpop.f32.mrb[0].mxu0
    %v1127 = vadd.f32 %v1086, %v1126
    %v1128 = vpop.f32.mrb[0].mxu0
    %v1129 = vpop.f32.mrb[0].mxu0
    %v1130 = vadd.f32 %v1089, %v1129
    %v1131 = vpop.f32.mrb[0].mxu0
    %1132 = vdwg.mxu0
    %v1133 = vtanh.pop %v1043
    %v1134 = vtanh.pop %v1045
    %v1135 = vtanh.pop %v1127
    %v1136 = vtanh.pop %v1047
    %v1137 = vtanh.pop %v1049
    %v1138 = vtanh.pop %v1130
    %v1139 = vpack.c.bf16 %v1136, %v1133
    %v1140 = vld [vmem:[#allocation3 + $0x3c0] sm:$0xff]
    %v1141 = vld [vmem:[#allocation3 + $0x3cc] sm:$0xff]
    %v1142 = vld [vmem:[#allocation3 + $0x3d8] sm:$0xff]
    %v1143 = vld [vmem:[#allocation3 + $0x3e4] sm:$0xff]
    %v1144 = vld [vmem:[#allocation3 + $0x3f0] sm:$0xff]
    %v1145 = vld [vmem:[#allocation3 + $0x3fc] sm:$0xff]
    %v1146 = vld [vmem:[#allocation3 + $0x408] sm:$0xff]
    %v1147 = vld [vmem:[#allocation3 + $0x414] sm:$0xff]
    %v1148 = vld [vmem:[#allocation3 + $0x420] sm:$0xff]
    %v1149 = vld [vmem:[#allocation3 + $0x42c] sm:$0xff]
    %v1150 = vld [vmem:[#allocation3 + $0x438] sm:$0xff]
    %v1151 = vld [vmem:[#allocation3 + $0x444] sm:$0xff]
    %v1152 = vld [vmem:[#allocation3 + $0x450] sm:$0xff]
    %v1153 = vld [vmem:[#allocation3 + $0x45c] sm:$0xff]
    %v1154 = vld [vmem:[#allocation3 + $0x468] sm:$0xff]
    %v1155 = vld [vmem:[#allocation3 + $0x474] sm:$0xff]
    %v1156 = vld [vmem:[%s2 + $0x3] sm:$0x3]
    %v1158 = vlaneseq
    %v1159 = vshrl.u32 %v1158, 7
    %v1160 = vsub.s32 0, %v1159
    %v1161 = vrot.slane %v1156, %v1160
    %v1162 = vlaneseq
    %v1163 = vshrl.u32 %v1162, 7
    %v1164 = vsub.s32 1, %v1163
    %v1165 = vrot.slane %v1156, %v1164
    %v1184 = vunpack.c.l.b16 %v1140
    %v1185 = vunpack.c.h.b16 %v1140
    %v1186 = vunpack.c.l.b16 %v1141
    %v1187 = vunpack.c.h.b16 %v1141
    %v1188 = vunpack.c.l.b16 %v1142
    %v1189 = vunpack.c.h.b16 %v1142
    %v1190 = vunpack.c.l.b16 %v1143
    %v1191 = vunpack.c.h.b16 %v1143
    %v1192 = vunpack.c.l.b16 %v1144
    %v1193 = vunpack.c.h.b16 %v1144
    %v1194 = vunpack.c.l.b16 %v1145
    %v1195 = vunpack.c.h.b16 %v1145
    %v1196 = vunpack.c.l.b16 %v1146
    %v1197 = vunpack.c.h.b16 %v1146
    %v1198 = vunpack.c.l.b16 %v1147
    %v1199 = vunpack.c.h.b16 %v1147
    %v1200 = vunpack.c.l.b16 %v1148
    %v1201 = vunpack.c.h.b16 %v1148
    %v1202 = vunpack.c.l.b16 %v1149
    %v1203 = vunpack.c.h.b16 %v1149
    %v1204 = vunpack.c.l.b16 %v1150
    %v1205 = vunpack.c.h.b16 %v1150
    %v1206 = vunpack.c.l.b16 %v1151
    %v1207 = vunpack.c.h.b16 %v1151
    %v1208 = vunpack.c.l.b16 %v1152
    %v1209 = vunpack.c.h.b16 %v1152
    %v1210 = vunpack.c.l.b16 %v1153
    %v1211 = vunpack.c.h.b16 %v1153
    %v1212 = vunpack.c.l.b16 %v1154
    %v1213 = vunpack.c.h.b16 %v1154
    %v1214 = vunpack.c.l.b16 %v1155
    %v1215 = vunpack.c.h.b16 %v1155
    %v1216 = vpack.c.b16 %v1186, %v1184
    %v1217 = vpack.c.b16 %v1187, %v1185
    %v1218 = vpack.c.b16 %v1190, %v1188
    %v1219 = vpack.c.b16 %v1191, %v1189
    %v1220 = vpack.c.b16 %v1194, %v1192
    %v1221 = vpack.c.b16 %v1195, %v1193
    %v1222 = vpack.c.b16 %v1198, %v1196
    %v1223 = vpack.c.b16 %v1199, %v1197
    %v1224 = vpack.c.b16 %v1202, %v1200
    %v1225 = vpack.c.b16 %v1203, %v1201
    %v1226 = vpack.c.b16 %v1206, %v1204
    %v1227 = vpack.c.b16 %v1207, %v1205
    %v1228 = vpack.c.b16 %v1210, %v1208
    %v1229 = vpack.c.b16 %v1211, %v1209
    %v1230 = vpack.c.b16 %v1214, %v1212
    %v1231 = vpack.c.b16 %v1215, %v1213
    %1248 = vmatprep.subr.bf16.mxu0 %v1217
    %1249 = vmatpush1.bf16.msra.mxu0 %v1216
    %1250 = vmatprep.subr.bf16.mxu0 %v1219
    %1251 = vmatpush1.bf16.msra.mxu0 %v1218
    %1252 = vmatprep.subr.bf16.mxu0 %v1221
    %1253 = vmatpush1.bf16.msra.mxu0 %v1220
    %1254 = vmatprep.subr.bf16.mxu0 %v1223
    %1255 = vmatpush1.bf16.msra.mxu0 %v1222
    %1256 = vmatprep.subr.bf16.mxu0 %v1225
    %1257 = vmatpush1.bf16.msra.mxu0 %v1224
    %1258 = vmatprep.subr.bf16.mxu0 %v1227
    %1259 = vmatpush1.bf16.msra.mxu0 %v1226
    %1260 = vmatprep.subr.bf16.mxu0 %v1229
    %1261 = vmatpush1.bf16.msra.mxu0 %v1228
    %1262 = vmatprep.subr.bf16.mxu0 %v1231
    %1263 = vmatpush1.bf16.msra.mxu0 %v1230
    %1264 = vmatprep.subr.bf16.mxu0 0
    %1265 = vmatpush1.bf16.msra.mxu0 0
    %1266 = vmatprep.subr.bf16.mxu0 0
    %1267 = vmatpush1.bf16.msra.mxu0 0
    %1268 = vmatprep.subr.bf16.mxu0 0
    %1269 = vmatpush1.bf16.msra.mxu0 0
    %1270 = vmatprep.subr.bf16.mxu0 0
    %1271 = vmatpush1.bf16.msra.mxu0 0
    %1272 = vmatprep.subr.bf16.mxu0 0
    %1273 = vmatpush1.bf16.msra.mxu0 0
    %1274 = vmatprep.subr.bf16.mxu0 0
    %1275 = vmatpush1.bf16.msra.mxu0 0
    %1276 = vmatprep.subr.bf16.mxu0 0
    %1277 = vmatpush1.bf16.msra.mxu0 0
    %1278 = vmatprep.subr.bf16.mxu0 0
    %1279 = vmatpush1.bf16.msra.mxu0 0
    %1280 = vmatprep.mubr.bf16.mxu0 0
    %1281 = vmatmul.mubr.bf16.gmra.mrb[0].mxu0 %v1139
    %v1282 = vpop.f32.mrb[0].mxu0
    %v1283 = vadd.f32 %v1161, %v1282
    %v1284 = vpop.f32.mrb[0].mxu0
    %v1285 = vadd.f32 %v1165, %v1284
    %v1286 = vpop.f32.mrb[0].mxu0
    %v1287 = vadd.f32 %v1161, %v1286
    %v1288 = vpop.f32.mrb[0].mxu0
    %v1289 = vadd.f32 %v1165, %v1288
    %1290 = vdwg.mxu0
    %v1291 = vmax.f32 %v1283, %v1285
    %1292 = vmax.xlane.f32.xlu0 %v1291
    %v1293 = vpop.xlane.xlu0 %1292
    %v1294 = vmax.f32 %v1287, %v1289
    %1295 = vmax.xlane.f32.xlu0 %v1294
    %v1296 = vpop.xlane.xlu0 %1295
    %v1297 = vsub.f32 %v1283, %v1293
    %v1298 = vsub.f32 %v1285, %v1293
    %v1299 = vsub.f32 %v1287, %v1296
    %v1300 = vsub.f32 %v1289, %v1296
    %v1301 = vmul.f32 %v1297, 1.442695
    %v1302 = vpow.pop %v1301
    %v1303 = vmul.f32 %v1298, 1.442695
    %v1304 = vpow.pop %v1303
    %v1305 = vmul.f32 %v1299, 1.442695
    %v1306 = vpow.pop %v1305
    %v1307 = vmul.f32 %v1300, 1.442695
    %v1308 = vpow.pop %v1307
    %v1309 = vadd.f32 %v1302, %v1304
    %1310 = vadd.xlane.f32.xlu0 %v1309
    %v1311 = vpop.xlane.xlu0 %1310
    %v1312 = vadd.f32 %v1306, %v1308
    %1313 = vadd.xlane.f32.xlu0 %v1312
    %v1314 = vpop.xlane.xlu0 %1313
    %v1315 = vlog2.pop %v1311
    %v1316 = vmul.f32 %v1315, 0.6931472
    %v1317 = vlog2.pop %v1314
    %v1318 = vmul.f32 %v1317, 0.6931472
    %v1319 = vadd.f32 %v1316, %v1293
    %v1320 = vadd.f32 %v1318, %v1296
    %1321 = vset.pattern.permute.xlu0 1
    %1322 = vperm.xlu0 %1321, %v34
    %v1323 = vpop.permute.xlu0 %1322
    %1324 = vset.pattern.permute.xlu0 1
    %1325 = vperm.xlu0 %1324, %v35
    %v1326 = vpop.permute.xlu0 %1325
    %vm1327 = vcmp.eq.s32.totalorder %v39, %v1323
    %vm1328 = vcmp.eq.s32.totalorder %v40, %v1323
    %vm1329 = vcmp.eq.s32.totalorder %v39, %v1326
    %vm1330 = vcmp.eq.s32.totalorder %v40, %v1326
    %v1331 = vsel %vm1327, %v1283, 0.0
    %v1332 = vsel %vm1328, %v1285, 0.0
    %v1333 = vsel %vm1329, %v1287, 0.0
    %v1334 = vsel %vm1330, %v1289, 0.0
    %v1335 = vadd.f32 %v1331, %v1332
    %1336 = vadd.xlane.f32.xlu0 %v1335
    %v1337 = vpop.xlane.xlu0 %1336
    %v1338 = vadd.f32 %v1333, %v1334
    %1339 = vadd.xlane.f32.xlu0 %v1338
    %v1340 = vpop.xlane.xlu0 %1339
    %vm1341 = vcmp.ge.s32.totalorder %v34, 0
    %vm1342 = vcmp.ge.s32.totalorder %v35, 0
    %v1343 = vsel %vm1341, 1, 0
    %v1344 = vsel %vm1342, 1, 0
    %v1345 = vcvt.s32.f32 %v1343
    %v1346 = vcvt.s32.f32 %v1344
    %v1347 = vsub.f32 %v1319, %v1337
    %v1348 = vsub.f32 %v1320, %v1340
    %v1349 = vmul.f32 %v1345, %v1347
    %v1350 = vmul.f32 %v1346, %v1348
    %1353 = vrot.lane.b32.xlu0 %v1349, 127
    %v1354 = vpop.permute.xlu0 %1353
    %1355 = vrot.lane.b32.xlu0 %v1350, 127
    %v1356 = vpop.permute.xlu0 %1355
    %vm1359 = vcmask 7168
    %v1360 = vsel %vm1359, %v1354, 0.0
    %v1361 = vsel %vm1359, %v1356, 0.0
    %v1362 = vadd.f32 %v1360, %v1361
    %1363 = vadd.xlane.f32.xlu0 %v1362
    %v1364 = vpop.xlane.xlu0 %1363
    %v1365 = vrot.slane %v1364, 4
    %v1366 = vadd.f32 %v1364, %v1365
    %v1367 = vrot.slane %v1366, 2
    %v1368 = vadd.f32 %v1366, %v1367
    %v1369 = vrot.slane %v1368, 1
    %v1370 = vadd.f32 %v1368, %v1369
    %s1371 = vtos %v1370
    %1374 = vrot.lane.b32.xlu0 %v1345, 127
    %v1375 = vpop.permute.xlu0 %1374
    %1376 = vrot.lane.b32.xlu0 %v1346, 127
    %v1377 = vpop.permute.xlu0 %1376
    %v1380 = vsel %vm1359, %v1375, 0.0
    %v1381 = vsel %vm1359, %v1377, 0.0
    %v1382 = vadd.f32 %v1380, %v1381
    %1383 = vadd.xlane.f32.xlu0 %v1382
    %v1384 = vpop.xlane.xlu0 %1383
    %v1385 = vrot.slane %v1384, 4
    %v1386 = vadd.f32 %v1384, %v1385
    %v1387 = vrot.slane %v1386, 2
    %v1388 = vadd.f32 %v1386, %v1387
    %v1389 = vrot.slane %v1388, 1
    %v1390 = vadd.f32 %v1388, %v1389
    %s1391 = vtos %v1390
    %s1392 = smax.f32 %s1391, 1.0
    %v1393 = vstv %s1392
    %v1394 = vrcp.pop %v1393
    %s1395 = vtos %v1394
    %s1396 = smul.f32 %s1371, %s1395
    %v1397 = vadd.f32 %v1283, %v1285
    %v1398 = vadd.f32 %v1397, %v1287
    %v1399 = vadd.f32 %v1398, %v1289
    %1400 = vadd.xlane.f32.xlu0 %v1399
    %v1401 = vpop.xlane.xlu0 %1400
    %v1402 = vrot.slane %v1401, 4
    %v1403 = vadd.f32 %v1401, %v1402
    %v1404 = vrot.slane %v1403, 2
    %v1405 = vadd.f32 %v1403, %v1404
    %v1406 = vrot.slane %v1405, 1
    %v1407 = vadd.f32 %v1405, %v1406
    %s1408 = vtos %v1407
    %v1409 = vrcp.pop 4096.0
    %s1410 = vtos %v1409
    %s1411 = smul.f32 %s1408, %s1410
    %1413 = vset.pattern.permute.xlu0 2
    %1414 = vperm.xlu0 %1413, %v36
    %v1415 = vpop.permute.xlu0 %1414
    %1418 = vset.pattern.permute.xlu0 2
    %1419 = vperm.xlu0 %1418, %v37
    %v1420 = vpop.permute.xlu0 %1419
    %v1422 = vmul.f32 %v1134, %v1415
    %v1423 = vmul.f32 %v1137, %v1420
    %v1424 = vrot.slane %v1422, 4
    %v1425 = vadd.f32 %v1422, %v1424
    %v1426 = vrot.slane %v1425, 2
    %v1427 = vadd.f32 %v1425, %v1426
    %v1428 = vrot.slane %v1427, 1
    %v1429 = vadd.f32 %v1427, %v1428
    %v1430 = vrot.slane %v1423, 4
    %v1431 = vadd.f32 %v1423, %v1430
    %v1432 = vrot.slane %v1431, 2
    %v1433 = vadd.f32 %v1431, %v1432
    %v1434 = vrot.slane %v1433, 1
    %v1435 = vadd.f32 %v1433, %v1434
    %vm1436 = vcmask 23568
    %v1437 = vsel %vm1436, %v36, 0.0
    %v1438 = vrot.slane %v1437, 4
    %v1439 = vadd.f32 %v1437, %v1438
    %v1440 = vrot.slane %v1439, 2
    %v1441 = vadd.f32 %v1439, %v1440
    %v1442 = vrot.slane %v1441, 1
    %v1443 = vadd.f32 %v1441, %v1442
    %v1444 = vsel %vm1436, %v37, 0.0
    %v1445 = vrot.slane %v1444, 4
    %v1446 = vadd.f32 %v1444, %v1445
    %v1447 = vrot.slane %v1446, 2
    %v1448 = vadd.f32 %v1446, %v1447
    %v1449 = vrot.slane %v1448, 1
    %v1450 = vadd.f32 %v1448, %v1449
    %v1451 = vmax.f32 %v1443, 1.0
    %v1452 = vmax.f32 %v1450, 1.0
    %v1453 = vrcp.pop %v1451
    %v1454 = vrcp.pop %v1452
    %1456 = vset.pattern.permute.xlu0 2
    %1457 = vperm.xlu0 %1456, %v1453
    %v1458 = vpop.permute.xlu0 %1457
    %1461 = vset.pattern.permute.xlu0 2
    %1462 = vperm.xlu0 %1461, %v1454
    %v1463 = vpop.permute.xlu0 %1462
    %v1465 = vmul.f32 %v1429, %v1458
    %v1466 = vmul.f32 %v1435, %v1463
    %v1467 = vpack.c.bf16 %v1465, %v1465
    %v1468 = vpack.c.bf16 %v1466, %v1466
    %v1469 = vld [vmem:[#allocation3 + $0x3c8] sm:$0xf]
    %v1470 = vld [vmem:[#allocation3 + $0x3d4] sm:$0xf]
    %v1471 = vld [vmem:[#allocation3 + $0x3e0] sm:$0xf]
    %v1472 = vld [vmem:[#allocation3 + $0x3ec] sm:$0xf]
    %v1473 = vld [vmem:[#allocation3 + $0x3f8] sm:$0xf]
    %v1474 = vld [vmem:[#allocation3 + $0x404] sm:$0xf]
    %v1475 = vld [vmem:[#allocation3 + $0x410] sm:$0xf]
    %v1476 = vld [vmem:[#allocation3 + $0x41c] sm:$0xf]
    %v1477 = vld [vmem:[#allocation3 + $0x428] sm:$0xf]
    %v1478 = vld [vmem:[#allocation3 + $0x434] sm:$0xf]
    %v1479 = vld [vmem:[#allocation3 + $0x440] sm:$0xf]
    %v1480 = vld [vmem:[#allocation3 + $0x44c] sm:$0xf]
    %v1481 = vld [vmem:[#allocation3 + $0x458] sm:$0xf]
    %v1482 = vld [vmem:[#allocation3 + $0x464] sm:$0xf]
    %v1483 = vld [vmem:[#allocation3 + $0x470] sm:$0xf]
    %v1484 = vld [vmem:[#allocation3 + $0x47c] sm:$0xf]
    %v1485 = vld [vmem:[%s2 + $0x5] sm:$0x1]
    %v1487 = vlaneseq
    %v1488 = vshrl.u32 %v1487, 7
    %v1489 = vsub.s32 0, %v1488
    %v1490 = vrot.slane %v1485, %v1489
    %v1494 = vunpack.c.l.b16 %v1467
    %v1495 = vunpack.c.l.b16 %v1468
    %vm1496 = vcmask 1041409
    %v1497 = vsel %vm1496, %v1495, %v1494
    %v1498 = vpack.c.b16 %v1497, %v1497
    %v1516 = vunpack.c.l.b16 %v1469
    %v1517 = vunpack.c.l.b16 %v1470
    %v1518 = vunpack.c.l.b16 %v1471
    %v1519 = vunpack.c.l.b16 %v1472
    %v1520 = vunpack.c.l.b16 %v1473
    %v1521 = vunpack.c.l.b16 %v1474
    %v1522 = vunpack.c.l.b16 %v1475
    %v1523 = vunpack.c.l.b16 %v1476
    %v1524 = vunpack.c.l.b16 %v1477
    %v1525 = vunpack.c.l.b16 %v1478
    %v1526 = vunpack.c.l.b16 %v1479
    %v1527 = vunpack.c.l.b16 %v1480
    %v1528 = vunpack.c.l.b16 %v1481
    %v1529 = vunpack.c.l.b16 %v1482
    %v1530 = vunpack.c.l.b16 %v1483
    %v1531 = vunpack.c.l.b16 %v1484
    %v1532 = vpack.c.b16 %v1517, %v1516
    %v1533 = vpack.c.b16 %v1519, %v1518
    %v1534 = vpack.c.b16 %v1521, %v1520
    %v1535 = vpack.c.b16 %v1523, %v1522
    %v1536 = vpack.c.b16 %v1525, %v1524
    %v1537 = vpack.c.b16 %v1527, %v1526
    %v1538 = vpack.c.b16 %v1529, %v1528
    %v1539 = vpack.c.b16 %v1531, %v1530
    %1548 = vmatprep.subr.bf16.mxu0 0
    %1549 = vmatpush1.bf16.msra.mxu0 %v1532
    %1550 = vmatprep.subr.bf16.mxu0 0
    %1551 = vmatpush1.bf16.msra.mxu0 %v1533
    %1552 = vmatprep.subr.bf16.mxu0 0
    %1553 = vmatpush1.bf16.msra.mxu0 %v1534
    %1554 = vmatprep.subr.bf16.mxu0 0
    %1555 = vmatpush1.bf16.msra.mxu0 %v1535
    %1556 = vmatprep.subr.bf16.mxu0 0
    %1557 = vmatpush1.bf16.msra.mxu0 %v1536
    %1558 = vmatprep.subr.bf16.mxu0 0
    %1559 = vmatpush1.bf16.msra.mxu0 %v1537
    %1560 = vmatprep.subr.bf16.mxu0 0
    %1561 = vmatpush1.bf16.msra.mxu0 %v1538
    %1562 = vmatprep.subr.bf16.mxu0 0
    %1563 = vmatpush1.bf16.msra.mxu0 %v1539
    %1564 = vmatprep.subr.bf16.mxu0 0
    %1565 = vmatpush1.bf16.msra.mxu0 0
    %1566 = vmatprep.subr.bf16.mxu0 0
    %1567 = vmatpush1.bf16.msra.mxu0 0
    %1568 = vmatprep.subr.bf16.mxu0 0
    %1569 = vmatpush1.bf16.msra.mxu0 0
    %1570 = vmatprep.subr.bf16.mxu0 0
    %1571 = vmatpush1.bf16.msra.mxu0 0
    %1572 = vmatprep.subr.bf16.mxu0 0
    %1573 = vmatpush1.bf16.msra.mxu0 0
    %1574 = vmatprep.subr.bf16.mxu0 0
    %1575 = vmatpush1.bf16.msra.mxu0 0
    %1576 = vmatprep.subr.bf16.mxu0 0
    %1577 = vmatpush1.bf16.msra.mxu0 0
    %1578 = vmatprep.subr.bf16.mxu0 0
    %1579 = vmatpush1.bf16.msra.mxu0 0
    %1580 = vmatprep.mubr.bf16.mxu0 0
    %1581 = vmatmul.mubr.bf16.gmra.mrb[0].mxu0 %v1498
    %v1582 = vpop.f32.mrb[0].mxu0
    %v1583 = vadd.f32 %v1490, %v1582
    %v1584 = vpop.f32.mrb[0].mxu0
    %v1585 = vpop.f32.mrb[0].mxu0
    %v1586 = vpop.f32.mrb[0].mxu0
    %1587 = vdwg.mxu0
    %vm1588 = vcmp.lt.s32.totalorder %v39, 2
    %v1589 = vsel %vm1588, %v1583, -1e+30
    %vm1590 = vcmask 1041408
    %v1591 = vsel %vm1590, %v1589, -inf
    %1592 = vmax.xlane.f32.xlu0 %v1591
    %v1593 = vpop.xlane.xlu0 %1592
    %v1594 = vsub.f32 %v1589, %v1593
    %v1595 = vmul.f32 %v1594, 1.442695
    %v1596 = vpow.pop %v1595
    %v1597 = vsel %vm1590, %v1596, 0.0
    %1598 = vadd.xlane.f32.xlu0 %v1597
    %v1599 = vpop.xlane.xlu0 %1598
    %v1600 = vlog2.pop %v1599
    %v1601 = vmul.f32 %v1600, 0.6931472
    %v1602 = vadd.f32 %v1601, %v1593
    %1603 = vset.pattern.permute.xlu0 3
    %1604 = vperm.xlu0 %1603, %v34
    %v1605 = vpop.permute.xlu0 %1604
    %vm1606 = vcmp.eq.s32.totalorder %v39, %v1605
    %v1607 = vsel %vm1606, %v1583, 0.0
    %v1608 = vsel %vm1590, %v1607, 0.0
    %1609 = vadd.xlane.f32.xlu0 %v1608
    %v1610 = vpop.xlane.xlu0 %1609
    %v1611 = vsub.f32 %v1602, %v1610
    %v1612 = vmul.f32 %v1345, %v1611
    %1614 = vrot.lane.b32.xlu0 %v1612, 125
    %v1615 = vpop.permute.xlu0 %1614
    %vm1617 = vcmask 1024
    %v1618 = vsel %vm1617, %v1615, 0.0
    %1619 = vadd.xlane.f32.xlu0 %v1618
    %v1620 = vpop.xlane.xlu0 %1619
    %v1621 = vrot.slane %v1620, 4
    %v1622 = vadd.f32 %v1620, %v1621
    %v1623 = vrot.slane %v1622, 2
    %v1624 = vadd.f32 %v1622, %v1623
    %v1625 = vrot.slane %v1624, 1
    %v1626 = vadd.f32 %v1624, %v1625
    %s1627 = vtos %v1626
    %1628 = vrot.lane.b32.xlu0 %v1345, 125
    %v1629 = vpop.permute.xlu0 %1628
    %v1631 = vsel %vm1617, %v1629, 0.0
    %1632 = vadd.xlane.f32.xlu0 %v1631
    %v1633 = vpop.xlane.xlu0 %1632
    %v1634 = vrot.slane %v1633, 4
    %v1635 = vadd.f32 %v1633, %v1634
    %v1636 = vrot.slane %v1635, 2
    %v1637 = vadd.f32 %v1635, %v1636
    %v1638 = vrot.slane %v1637, 1
    %v1639 = vadd.f32 %v1637, %v1638
    %s1640 = vtos %v1639
    %s1641 = smax.f32 %s1640, 1.0
    %v1642 = vstv %s1641
    %v1643 = vrcp.pop %v1642
    %s1644 = vtos %v1643
    %s1645 = smul.f32 %s1627, %s1644
    %v1646 = vmul.f32 %v1133, %v1135
    %v1647 = vmul.f32 %v1136, %v1138
    %1648 = vadd.xlane.f32.xlu0 %v1646
    %v1649 = vpop.xlane.xlu0 %1648
    %1650 = vadd.xlane.f32.xlu0 %v1647
    %v1651 = vpop.xlane.xlu0 %1650
    %v1652 = vmul.f32 %v1133, %v1133
    %v1653 = vmul.f32 %v1136, %v1136
    %1654 = vadd.xlane.f32.xlu0 %v1652
    %v1655 = vpop.xlane.xlu0 %1654
    %1656 = vadd.xlane.f32.xlu0 %v1653
    %v1657 = vpop.xlane.xlu0 %1656
    %v1658 = vmul.f32 %v1135, %v1135
    %v1659 = vmul.f32 %v1138, %v1138
    %1660 = vadd.xlane.f32.xlu0 %v1658
    %v1661 = vpop.xlane.xlu0 %1660
    %1662 = vadd.xlane.f32.xlu0 %v1659
    %v1663 = vpop.xlane.xlu0 %1662
    %v1664 = vmul.f32 %v1655, %v1661
    %v1665 = vmul.f32 %v1657, %v1663
    %v1666 = vmax.f32 %v1664, 1e-16
    %v1667 = vmax.f32 %v1665, 1e-16
    %v1668 = vrsqrt.pop %v1666
    %v1669 = vrsqrt.pop %v1667
    %v1670 = vmul.f32 %v1649, %v1668
    %v1671 = vmul.f32 %v1651, %v1669
    %v1672 = vsel %vm1359, %v1670, 0.0
    %v1673 = vsel %vm1359, %v1671, 0.0
    %v1674 = vadd.f32 %v1672, %v1673
    %1675 = vadd.xlane.f32.xlu0 %v1674
    %v1676 = vpop.xlane.xlu0 %1675
    %v1677 = vrot.slane %v1676, 4
    %v1678 = vadd.f32 %v1676, %v1677
    %v1679 = vrot.slane %v1678, 2
    %v1680 = vadd.f32 %v1678, %v1679
    %v1681 = vrot.slane %v1680, 1
    %v1682 = vadd.f32 %v1680, %v1681
    %s1683 = vtos %v1682
    %v1684 = vrcp.pop 16.0
    %s1685 = vtos %v1684
    %s1686 = smul.f32 %s1683, %s1685
    %s1687 = sld [smem:[#allocation2]]
    %s1688 = smul.f32 %s1396, 0.6
    %s1689 = smul.f32 %s1645, 0.4
    %s1690 = sadd.f32 %s1688, %s1689
    %s1691 = smul.f32 %s1396, 0.5
    %s1692 = sadd.f32 %s1691, %s1689
    %s1693 = smul.f32 %s1396, 0.1
    %s1694 = smul.f32 %s1693, %s1686
    %s1695 = sadd.f32 %s1692, %s1694
    %p1696 = scmp.gt.f32.partialorder %s1411, %s1687
    %s1697 = scalar_select %p1696, %s1690, %s1695
    %vm1698 = vcmp.eq.s32.totalorder %v39, 0
    %v1699 = vstv %s1697
    %v1700 = vsel %vm1698, %v1699, 0.0
    %vm1701 = vcmp.eq.s32.totalorder %v39, 1
    %v1702 = vstv %s1396
    %v1703 = vsel %vm1701, %v1702, %v1700
    %vm1704 = vcmp.eq.s32.totalorder %v39, 2
    %v1705 = vstv %s1645
    %v1706 = vsel %vm1704, %v1705, %v1703
    %vm1707 = vcmp.eq.s32.totalorder %v39, 3
    %v1708 = vstv %s1686
    %v1709 = vsel %vm1707, %v1708, %v1706
    %vm1710 = vcmp.eq.s32.totalorder %v39, 4
    %v1711 = vstv %s1411
    %v1712 = vsel %vm1710, %v1711, %v1709
    %1713 = vst [vmem:[#allocation6] sm:$0x1] %v1712
    // Predicated region
    $region22: #{multitask_forward.1} parent=1 // pred_check
      _
    $region23: #{multitask_forward.1} parent=1 // pred_check_branch
      %1715 = sbr.rel (0) target = $region25
    $region24: #{multitask_forward.1} parent=1 // pred_region
      %s1717 = ssub.s32 16, 16
      %1718 = vsyncadd [#allocation5], %s1717
      %s1720 = sshll.u32 [#allocation6], 4
      %s1721 = int_to_ptr.vmem [resolvable:$true] %s1720
      %1723 = dma.vmem_to_hbm [thread:$0]  %s1721, 16, %s4, [#allocation5]
    $region25: #{multitask_forward.1} parent=1 // pred_fallthru
      _
    // Predicated region
    $region26: #{multitask_forward.1} parent=1 // pred_check
      _
    $region27: #{multitask_forward.1} parent=1 // pred_check_branch
      %1725 = sbr.rel (0) target = $region29
    $region28: #{multitask_forward.1} parent=1 // pred_region
      %1726 = dma.done [#allocation5], 16
    $region29: #{multitask_forward.1} parent=1 // pred_fallthru
      _
    %1727 = vsyncpa [#allocation4], 1
    %1728 = vsyncpa [#allocation5], 1

</llo_original>
